<compile_context>
chip_gen: v7x
topology: tpu7x:2x2x1
jax: 0.10.0
libtpu: 0.0.40
codegen_flags: <defaults>
</compile_context>

<pallas_src>
import jax
import jax.numpy as jnp
from jax.experimental import pallas as pl
from jax.experimental.pallas import tpu as pltpu


def _round_up(x, m):
    return pl.cdiv(x, m) * m


def _choose_tb(B, D, *, bytes_per_row, target_bytes=2 << 20, min_steps=8):
    """Pick the batch tile so each grid step moves ~target_bytes of HBM traffic,
    but never fewer than min_steps grid steps (>= min_steps/2 per v7x TensorCore)."""
    tb = max(256, _round_up(max(8, target_bytes // max(1, bytes_per_row)), 8))
    tb = min(tb, max(8, _round_up(pl.cdiv(B, min_steps), 8)))
    return int(tb)


def _kge_biview_kernel(gamma_ref, hmt_ref, rsum_ref, p_ref, score_ref, r_out_ref):
    """One (tb, D) batch tile.

    r     = (r_o + r_w) @ P          with P = proj @ proj.T (precomputed in wrapper)
    score = gamma - || (head - tail) + r ||_1
    """
    gamma = gamma_ref[0]                                     # SMEM scalar

    # Single MXU matmul per tile; f32 accumulation regardless of operand dtype.
    r = jnp.dot(rsum_ref[...], p_ref[...], preferred_element_type=jnp.float32)
    r_out_ref[...] = r

    # TransE ('single' mode) scoring on the VPU, kept in f32 (v5e VPU has no bf16).
    score_ref[...] = gamma - jnp.sum(jnp.abs(hmt_ref[...] + r),
                                     axis=-1, keepdims=True)


def kge_biview_forward(part, ontology_sample, params, *, tb=None,
                       matmul_dtype=jnp.float32):
    """mode='single' forward.  part, ontology_sample: (B, 3) int32 triples.

    Returns (score (B,1) f32, r_o (B,1,D) f32, r (B,1,D) f32), matching the PyTorch
    module's return structure (JAX arrays instead of .cpu().numpy()).

    matmul_dtype=jnp.bfloat16 halves the matmul-operand HBM/VMEM bytes on all
    generations (v5e/v6e/v7x MXUs all take bf16); accumulation and scoring stay f32.
    """
    ent = params["entity_embedding"]
    onto = params["onto_embed"]
    word = params["word_embed"]
    proj = params["proj"]
    gamma = jnp.asarray([params["gamma"]], dtype=jnp.float32)   # SMEM scalar input

    B = part.shape[0]
    D = ent.shape[1]                    # hidden_dim (= entity_dim = relation_dim)

    # --- wrapper-side gathers + stream reduction --------------------------------------
    # XLA fuses gather+gather+sub / gather+gather+add, so the kernel streams exactly two
    # (B, D) row tensors: hmt (f32) and r_sum (matmul dtype).  r_o is materialized
    # anyway because the module returns it.
    # TODO(synk): at production D (>= ~1-2k) move the entity gathers into the kernel
    # (PrefetchScalarGridSpec + pl.Element row blocks) so hmt never round-trips HBM.
    hmt = (ent[part[:, 0]] - ent[part[:, 2]]).astype(jnp.float32)       # (B, D)
    r_o = onto[ontology_sample[:, 1]]                                   # (B, D) returned
    r_sum = (r_o + word[ontology_sample[:, 1]]).astype(matmul_dtype)    # (B, D)

    # P = proj @ proj.T folds both view-projections + the back-projection into one
    # per-tile MXU matmul.  Keep BOTH MXU operands in the same dtype.
    p_mat = jnp.matmul(proj, proj.T,
                       precision=jax.lax.Precision.HIGHEST).astype(matmul_dtype)

    # --- batch tiling ------------------------------------------------------------------
    itemsize = jnp.dtype(matmul_dtype).itemsize
    bytes_per_row = D * (4 + itemsize) + D * 4 + 4     # hmt + r_sum in, r + score out
    if tb is None:
        tb = _choose_tb(B, D, bytes_per_row=bytes_per_row)
    if tb % 8 != 0:
        raise ValueError("tb must be a multiple of 8")
    B_pad = _round_up(B, tb)
    if B_pad != B:
        pad = ((0, B_pad - B), (0, 0))
        hmt_k = jnp.pad(hmt, pad)
        rsum_k = jnp.pad(r_sum, pad)
    else:
        hmt_k, rsum_k = hmt, r_sum
    # NOTE: padded rows score exactly gamma and are sliced off below; nothing consumes
    # score[B:] or r[B:].

    # TODO(synk): if production D stays tiny (e.g. 32), pack 128/D rows per lane row
    # (view the streamed tensors and r as (B*D/128, 128) with a block-diagonal P) to
    # recover vreg/store efficiency; at production D (multiple of 128) this is a no-op.
    row_spec = pl.BlockSpec((tb, D), lambda i: (i, 0))

    # Explicit scoped-VMEM budget: P (x2 for the fallback double-buffered case) plus
    # double-buffered row tiles and outputs, with slack for internal scratch.
    needed = 2 * D * D * itemsize + 2 * tb * bytes_per_row + (1 << 20)
    vmem_limit = int(min(128 << 20, max(32 << 20, needed)))

    cost = pl.CostEstimate(
        flops=2 * B_pad * D * D,
        transcendentals=0,
        bytes_accessed=B_pad * bytes_per_row + D * D * itemsize)

    def _call(p_spec):
        return pl.pallas_call(
            _kge_biview_kernel,
            out_shape=(jax.ShapeDtypeStruct((B_pad, 1), jnp.float32),
                       jax.ShapeDtypeStruct((B_pad, D), jnp.float32)),
            grid=(B_pad // tb,),
            in_specs=[pl.BlockSpec(memory_space=pltpu.MemorySpace.SMEM),  # gamma
                      row_spec,                                           # head - tail
                      row_spec,                                           # r_o + r_w
                      p_spec],                                            # P (resident)
            out_specs=(pl.BlockSpec((tb, 1), lambda i: (i, 0)),           # score
                       row_spec),                                         # r
            compiler_params=pltpu.CompilerParams(
                dimension_semantics=("parallel",),     # v7x: shard grid over both TCs
                vmem_limit_bytes=vmem_limit),
            cost_estimate=cost,
        )(gamma, hmt_k, rsum_k, p_mat)

    # TODO(synk): at production D on v7x (64 MiB VMEM) a resident (D, D) P does not fit;
    # restructure as a (batch, k)-tiled 'arbitrary' reduction grid with a (tb, D) f32
    # accumulator and do the L1/score in the last-k epilogue.
    try:
        # P's index_map is constant -> its second pipeline buffer is pure VMEM waste.
        score, r = _call(pl.BlockSpec((D, D), lambda i: (0, 0),
                                      pipeline_mode=pl.Buffered(1)))
    except Exception:
        # Fallback if this jax build rejects Buffered(1) on a pallas_call operand.
        score, r = _call(pl.BlockSpec((D, D), lambda i: (0, 0)))

    # match the PyTorch return shapes: score (B,1), r_o (B,1,D), r (B,1,D)
    return score[:B], r_o[:, None, :], r[:B, None, :]


def init_params(key, *, nentity, nrelation, hidden_dim, n_hidden, num_nodes,
                gamma=12.0):
    epsilon = 2.0
    er = (gamma + epsilon) / hidden_dim          # embedding_range
    k1, k2, k3, k4, k5 = jax.random.split(key, 5)
    return {
        "gamma": float(gamma),
        "entity_embedding": jax.random.uniform(
            k1, (nentity, hidden_dim), jnp.float32, -er, er),
        "relation_embedding": jax.random.uniform(
            k2, (nrelation, hidden_dim), jnp.float32, -er, er),
        "proj": jax.random.uniform(
            k3, (hidden_dim, n_hidden), jnp.float32, -er, er),
        # TODO(synk): stand-ins for OntologyRGCN / WordGCN outputs (num_nodes, hidden_dim)
        "onto_embed": 0.1 * jax.random.normal(
            k4, (num_nodes, hidden_dim), jnp.float32),
        "word_embed": 0.1 * jax.random.normal(
            k5, (num_nodes, hidden_dim), jnp.float32),
    }


def _reference_forward(part, ontology_sample, params):
    """Pure-JAX reference mirroring the PyTorch forward (mode='single', TransE)."""
    hi = jax.lax.Precision.HIGHEST
    ent, onto, word = (params["entity_embedding"], params["onto_embed"],
                       params["word_embed"])
    proj, gamma = params["proj"], params["gamma"]
    head = ent[part[:, 0]][:, None, :]
    tail = ent[part[:, 2]][:, None, :]
    r_o = onto[ontology_sample[:, 1]][:, None, :]
    r_w = word[ontology_sample[:, 1]][:, None, :]
    r_a = (jnp.matmul(r_o, proj, precision=hi)
           + jnp.matmul(r_w, proj, precision=hi))
    r = jnp.matmul(r_a, proj.T, precision=hi)     # AggregateR stand-in: r = r_a
    score = gamma - jnp.sum(jnp.abs(head + r - tail), axis=2)
    return score, r_o, r


if __name__ == "__main__":
    key = jax.random.PRNGKey(0)
    nentity, nrelation = 1000, 64
    hidden_dim, n_hidden, num_nodes = 32, 32, 256
    B = 2048        # auto-tb -> 256 rows/step -> 8 grid steps (>= 4 per v7x TensorCore)

    pkey, k_h, k_r, k_t, k_o = jax.random.split(key, 5)
    params = init_params(pkey, nentity=nentity, nrelation=nrelation,
                         hidden_dim=hidden_dim, n_hidden=n_hidden,
                         num_nodes=num_nodes, gamma=12.0)

    part = jnp.stack([
        jax.random.randint(k_h, (B,), 0, nentity),
        jax.random.randint(k_r, (B,), 0, nrelation),
        jax.random.randint(k_t, (B,), 0, nentity),
    ], axis=1).astype(jnp.int32)                                   # (B, 3)
    ontology_sample = jax.random.randint(
        k_o, (B, 3), 0, num_nodes).astype(jnp.int32)               # (B, 3)

    ref_score, ref_r_o, ref_r = _reference_forward(part, ontology_sample, params)

    # f32 path (matches the PyTorch module's numerics).
    score, r_o, r = kge_biview_forward(part, ontology_sample, params)
    jax.block_until_ready((score, r_o, r))

    assert score.shape == (B, 1)
    assert r_o.shape == (B, 1, hidden_dim)
    assert r.shape == (B, 1, hidden_dim)
    assert bool(jnp.all(jnp.isfinite(score)))
    assert bool(jnp.allclose(r_o, ref_r_o))
    assert bool(jnp.allclose(r, ref_r, atol=0.25)), \
        float(jnp.max(jnp.abs(r - ref_r)))
    assert bool(jnp.allclose(score, ref_score, atol=2.0)), \
        float(jnp.max(jnp.abs(score - ref_score)))

    # bf16 MXU-operand path (valid on v5e/v6e/v7x; f32 accumulation + f32 scoring).
    score_bf, _, r_bf = kge_biview_forward(part, ontology_sample, params,
                                           matmul_dtype=jnp.bfloat16)
    jax.block_until_ready((score_bf, r_bf))
    assert bool(jnp.all(jnp.isfinite(score_bf)))
    assert bool(jnp.allclose(r_bf, ref_r, atol=0.6)), \
        float(jnp.max(jnp.abs(r_bf - ref_r)))
    assert bool(jnp.allclose(score_bf, ref_score, atol=4.0)), \
        float(jnp.max(jnp.abs(score_bf - ref_score)))

    print("KERNEL_OK")
</pallas_src>

<mosaic_0001>
module attributes {stable_mosaic.version = 11 : i64} {
  func.func @_kge_biview_kernel(%arg0: i32, %arg1: memref<1xf32, #tpu.memory_space<smem>>, %arg2: memref<256x32xf32, #tpu.memory_space<vmem>>, %arg3: memref<256x32xf32, #tpu.memory_space<vmem>>, %arg4: memref<32x32xf32, #tpu.memory_space<vmem>>, %arg5: memref<256x1xf32, #tpu.memory_space<vmem>>, %arg6: memref<256x32xf32, #tpu.memory_space<vmem>>) attributes {dimension_semantics = [#tpu.dimension_semantics<parallel>], iteration_bounds = array<i64: 8>, scalar_prefetch = 0 : i64, scratch_operands = 0 : i64, tpu.core_type = #tpu.core_type<tc>, window_params = [{transform_indices = @transform_0, window_bounds = array<i64: 1>}, {transform_indices = @transform_1, window_bounds = array<i64: 256, 32>}, {transform_indices = @transform_2, window_bounds = array<i64: 256, 32>}, {pipeline_mode = #tpu.pipeline_mode<synchronous>, transform_indices = @transform_3, window_bounds = array<i64: 32, 32>}, {transform_indices = @transform_4, window_bounds = array<i64: 256, 1>}, {transform_indices = @transform_5, window_bounds = array<i64: 256, 32>}]} {
    %c0 = arith.constant 0 : index
    %0 = memref.load %arg1[%c0] : memref<1xf32, #tpu.memory_space<smem>>
    %c0_0 = arith.constant 0 : index
    %c0_1 = arith.constant 0 : index
    %1 = vector.load %arg3[%c0_0, %c0_1] : memref<256x32xf32, #tpu.memory_space<vmem>>, vector<256x32xf32>
    %c0_2 = arith.constant 0 : index
    %c0_3 = arith.constant 0 : index
    %2 = vector.load %arg4[%c0_2, %c0_3] : memref<32x32xf32, #tpu.memory_space<vmem>>, vector<32x32xf32>
    %cst = arith.constant dense<0.000000e+00> : vector<256x32xf32>
    %3 = tpu.matmul %1, %2, %cst {dimension_numbers = #tpu.dot_dimension_numbers<[1], [0], [0], [1], [0, 0, 1, 1], [], []>} : vector<256x32xf32>, vector<32x32xf32>, vector<256x32xf32> -> vector<256x32xf32>
    %c0_4 = arith.constant 0 : index
    %c0_5 = arith.constant 0 : index
    %4 = vector.load %arg6[%c0_4, %c0_5] : memref<256x32xf32, #tpu.memory_space<vmem>>, vector<256x32xf32>
    tpu.vector_store %arg6[%c0_4, %c0_5], %3 {strides = array<i32>} : memref<256x32xf32, #tpu.memory_space<vmem>>, vector<256x32xf32>,
    %c0_6 = arith.constant 0 : index
    %c0_7 = arith.constant 0 : index
    %5 = vector.load %arg2[%c0_6, %c0_7] : memref<256x32xf32, #tpu.memory_space<vmem>>, vector<256x32xf32>
    %6 = arith.addf %5, %3 : vector<256x32xf32>
    %7 = math.absf %6 : vector<256x32xf32>
    %cst_8 = arith.constant dense<0.000000e+00> : vector<256xf32>
    %8 = vector.multi_reduction <add>, %7, %cst_8 [1] : vector<256x32xf32> to vector<256xf32>
    %9 = vector.shape_cast %8 : vector<256xf32> to vector<256x1xf32>
    %10 = vector.broadcast %0 : f32 to vector<256x1xf32>
    %11 = arith.subf %10, %9 : vector<256x1xf32>
    %c0_9 = arith.constant 0 : index
    %c0_10 = arith.constant 0 : index
    %12 = vector.load %arg5[%c0_9, %c0_10] : memref<256x1xf32, #tpu.memory_space<vmem>>, vector<256x1xf32>
    tpu.vector_store %arg5[%c0_9, %c0_10], %11 {strides = array<i32>} : memref<256x1xf32, #tpu.memory_space<vmem>>, vector<256x1xf32>,
    return
  }
  func.func @transform_0(%arg0: i32) -> i32 {
    %c0_i32 = arith.constant 0 : i32
    %c0_i32_0 = arith.constant 0 : i32
    return %c0_i32 : i32
  }
  func.func @transform_1(%arg0: i32) -> (i32, i32) {
    %c0_i32 = arith.constant 0 : i32
    %c0_i32_0 = arith.constant 0 : i32
    return %arg0, %c0_i32 : i32, i32
  }
  func.func @transform_2(%arg0: i32) -> (i32, i32) {
    %c0_i32 = arith.constant 0 : i32
    %c0_i32_0 = arith.constant 0 : i32
    return %arg0, %c0_i32 : i32, i32
  }
  func.func @transform_3(%arg0: i32) -> (i32, i32) {
    %c0_i32 = arith.constant 0 : i32
    %c0_i32_0 = arith.constant 0 : i32
    %c0_i32_1 = arith.constant 0 : i32
    return %c0_i32, %c0_i32_0 : i32, i32
  }
  func.func @transform_4(%arg0: i32) -> (i32, i32) {
    %c0_i32 = arith.constant 0 : i32
    %c0_i32_0 = arith.constant 0 : i32
    return %arg0, %c0_i32 : i32, i32
  }
  func.func @transform_5(%arg0: i32) -> (i32, i32) {
    %c0_i32 = arith.constant 0 : i32
    %c0_i32_0 = arith.constant 0 : i32
    return %arg0, %c0_i32 : i32, i32
  }
}

module attributes {stable_mosaic.version = 11 : i64} {
  func.func @_kge_biview_kernel(%arg0: i32, %arg1: memref<1xf32, #tpu.memory_space<smem>>, %arg2: memref<256x32xf32, #tpu.memory_space<vmem>>, %arg3: memref<256x32xf32, #tpu.memory_space<vmem>>, %arg4: memref<32x32xf32, #tpu.memory_space<vmem>>, %arg5: memref<256x1xf32, #tpu.memory_space<vmem>>, %arg6: memref<256x32xf32, #tpu.memory_space<vmem>>) attributes {dimension_semantics = [#tpu.dimension_semantics<parallel>], iteration_bounds = array<i64: 8>, scalar_prefetch = 0 : i64, scratch_operands = 0 : i64, tpu.core_type = #tpu.core_type<tc>, window_params = [{transform_indices = @transform_0, window_bounds = array<i64: 1>}, {transform_indices = @transform_1, window_bounds = array<i64: 256, 32>}, {transform_indices = @transform_2, window_bounds = array<i64: 256, 32>}, {pipeline_mode = #tpu.pipeline_mode<synchronous>, transform_indices = @transform_3, window_bounds = array<i64: 32, 32>}, {transform_indices = @transform_4, window_bounds = array<i64: 256, 1>}, {transform_indices = @transform_5, window_bounds = array<i64: 256, 32>}]} {
    %c0 = arith.constant 0 : index
    %0 = memref.load %arg1[%c0] : memref<1xf32, #tpu.memory_space<smem>>
    %c0_0 = arith.constant 0 : index
    %c0_1 = arith.constant 0 : index
    %1 = vector.load %arg3[%c0_0, %c0_1] : memref<256x32xf32, #tpu.memory_space<vmem>>, vector<256x32xf32>
    %c0_2 = arith.constant 0 : index
    %c0_3 = arith.constant 0 : index
    %2 = vector.load %arg4[%c0_2, %c0_3] : memref<32x32xf32, #tpu.memory_space<vmem>>, vector<32x32xf32>
    %cst = arith.constant dense<0.000000e+00> : vector<256x32xf32>
    %3 = tpu.matmul %1, %2, %cst {dimension_numbers = #tpu.dot_dimension_numbers<[1], [0], [0], [1], [0, 0, 1, 1], [], []>} : vector<256x32xf32>, vector<32x32xf32>, vector<256x32xf32> -> vector<256x32xf32>
    %c0_4 = arith.constant 0 : index
    %c0_5 = arith.constant 0 : index
    %4 = vector.load %arg6[%c0_4, %c0_5] : memref<256x32xf32, #tpu.memory_space<vmem>>, vector<256x32xf32>
    tpu.vector_store %arg6[%c0_4, %c0_5], %3 {strides = array<i32>} : memref<256x32xf32, #tpu.memory_space<vmem>>, vector<256x32xf32>,
    %c0_6 = arith.constant 0 : index
    %c0_7 = arith.constant 0 : index
    %5 = vector.load %arg2[%c0_6, %c0_7] : memref<256x32xf32, #tpu.memory_space<vmem>>, vector<256x32xf32>
    %6 = arith.addf %5, %3 : vector<256x32xf32>
    %7 = math.absf %6 : vector<256x32xf32>
    %cst_8 = arith.constant dense<0.000000e+00> : vector<256xf32>
    %8 = vector.multi_reduction <add>, %7, %cst_8 [1] : vector<256x32xf32> to vector<256xf32>
    %9 = vector.shape_cast %8 : vector<256xf32> to vector<256x1xf32>
    %10 = vector.broadcast %0 : f32 to vector<256x1xf32>
    %11 = arith.subf %10, %9 : vector<256x1xf32>
    %c0_9 = arith.constant 0 : index
    %c0_10 = arith.constant 0 : index
    %12 = vector.load %arg5[%c0_9, %c0_10] : memref<256x1xf32, #tpu.memory_space<vmem>>, vector<256x1xf32>
    tpu.vector_store %arg5[%c0_9, %c0_10], %11 {strides = array<i32>} : memref<256x1xf32, #tpu.memory_space<vmem>>, vector<256x1xf32>,
    return
  }
  func.func @transform_0(%arg0: i32) -> i32 {
    %c0_i32 = arith.constant 0 : i32
    %c0_i32_0 = arith.constant 0 : i32
    return %c0_i32 : i32
  }
  func.func @transform_1(%arg0: i32) -> (i32, i32) {
    %c0_i32 = arith.constant 0 : i32
    %c0_i32_0 = arith.constant 0 : i32
    return %arg0, %c0_i32 : i32, i32
  }
  func.func @transform_2(%arg0: i32) -> (i32, i32) {
    %c0_i32 = arith.constant 0 : i32
    %c0_i32_0 = arith.constant 0 : i32
    return %arg0, %c0_i32 : i32, i32
  }
  func.func @transform_3(%arg0: i32) -> (i32, i32) {
    %c0_i32 = arith.constant 0 : i32
    %c0_i32_0 = arith.constant 0 : i32
    %c0_i32_1 = arith.constant 0 : i32
    return %c0_i32, %c0_i32_0 : i32, i32
  }
  func.func @transform_4(%arg0: i32) -> (i32, i32) {
    %c0_i32 = arith.constant 0 : i32
    %c0_i32_0 = arith.constant 0 : i32
    return %arg0, %c0_i32 : i32, i32
  }
  func.func @transform_5(%arg0: i32) -> (i32, i32) {
    %c0_i32 = arith.constant 0 : i32
    %c0_i32_0 = arith.constant 0 : i32
    return %arg0, %c0_i32 : i32, i32
  }
}

</mosaic_0001>

<llo_original>
// kernel: tpu_custom_call.1
$region0: #{tpu_custom_call.1}
  #allocation0 [shape = 'u32[]', space=smem, size = 0x4, offset = 0x4, fixed_abs, tag = 'smem constant byte address 0x4 - core index']
  #allocation1 [shape = 'u32[144,128]{1,0:T(1,128)}', space=vmem, size = 0x12000, scoped, tag = 'internal scratch']
  #allocation2 [shape = 'f32[1]{0:T(128)S(6)}', space=smem, size = 0x200, scoped, tag = 'scoped memory for tpu_custom_call.1']
  %s0 = inlined_call_operand.<no memory space> [shape: f32[1], index: 0, kind: input, shape index: {}]
  %s1 = inlined_call_operand.vmem [shape: f32[2048,32], index: 1, kind: input, shape index: {}]
  %s2 = inlined_call_operand.vmem [shape: f32[2048,32], index: 2, kind: input, shape index: {}]
  %s3 = inlined_call_operand.vmem [shape: f32[32,32], index: 3, kind: input, shape index: {}]
  %s4 = inlined_call_operand.vmem [shape: f32[2048,1], index: 4, kind: output, shape index: {0}]
  %s5 = inlined_call_operand.vmem [shape: f32[2048,32], index: 5, kind: output, shape index: {1}]
  %6 = xla_tuple %s4, %s5
  %s7 = sld [smem:[#allocation0]]
  $region57: #{tpu_custom_call.1} parent=0
    _
  %s9 = ssub.s32 1, %s7
  %s10 = scalar_select 0, %s9, %s7
  %11 = sst [smem:[#allocation2]] %s0
  loop: start=0, step=1, limit=10
  $region2: #{tpu_custom_call.1} parent=0 // loop_pre_header
    _
  $region3: #{tpu_custom_call.1} parent=0 // loop_header
    %s13 = sphi 0, %s17
    %p14 = scmp.ge.s32.totalorder %s13, 10
    %s21 = sphi 0, %s21
    %s23 = sphi 0, %s21
    %s24 = sphi 0, %s23
    %s38 = sphi 0, %s24
    %s44 = sphi 0, %s46
    %s47 = sphi 0, %s44
    %s48 = sphi 0, %s47
    %s64 = sphi 0, %s48
    %s70 = sphi 0, %s72
    %s73 = sphi 0, %s70
    %s74 = sphi 0, %s73
    %s90 = sphi 0, %s74
    %s94 = sphi 0, %s94
    %s96 = sphi 0, %s94
    %s97 = sphi 0, %s96
    %s111 = sphi 0, %s97
    %s117 = sphi 0, %s119
    %s120 = sphi 0, %s117
    %s121 = sphi 0, %s120
    %s137 = sphi 0, %s121
    %s143 = sphi 0, %s145
    %s146 = sphi 0, %s143
    %s147 = sphi 0, %s146
    %s163 = sphi 0, %s147
  $region4: #{tpu_custom_call.1} parent=0 // loop_header_branch
    %16 = sbr.rel (%p14) target = $region8
  $region5: #{tpu_custom_call.1} parent=0 // loop_body
    %s18 = ssub.s32 %s13, 1
    %s19 = ssub.s32 %s13, 2
    %s20 = sadd.s32 %s13, 1
    %s22 = sadd.s32 %s21, 1
    %p25 = scmp.eq.s32.totalorder %s13, 7
    %p26 = scmp.ne.s32.totalorder %s21, %s23
    %p27 = scmp.eq.s32.totalorder %s13, 0
    %p28 = por %p26, %p27
    %p29 = scmp.ne.s32.totalorder %s21, %s23
    %p30 = scmp.eq.s32.totalorder %s18, 7
    %p31 = por %p29, %p30
    %p32 = scmp.ne.s32.totalorder %s23, %s24
    %p33 = scmp.eq.s32.totalorder %s18, 0
    %p34 = por %p32, %p33
    %p35 = scmp.ne.s32.totalorder %s23, %s24
    %p36 = scmp.eq.s32.totalorder %s19, 7
    %p37 = por %p35, %p36
    %p39 = scmp.ne.s32.totalorder %s24, %s38
    %p40 = scmp.eq.s32.totalorder %s19, 0
    %p41 = por %p39, %p40
    %s42 = ssub.s32 %s13, %s20
    %p43 = scmp.eq.s32.totalorder %s42, 0
    %s45 = sadd.s32 %s44, 1
    %s46 = scalar_select %p43, %s44, %s45
    %p49 = pneg %p43
    %p50 = scmp.eq.s32.totalorder %s13, 7
    %p51 = por %p49, %p50
    %p52 = scmp.ne.s32.totalorder %s44, %s47
    %p53 = scmp.eq.s32.totalorder %s13, 0
    %p54 = por %p52, %p53
    %p55 = scmp.ne.s32.totalorder %s44, %s47
    %p56 = scmp.eq.s32.totalorder %s18, 7
    %p57 = por %p55, %p56
    %p58 = scmp.ne.s32.totalorder %s47, %s48
    %p59 = scmp.eq.s32.totalorder %s18, 0
    %p60 = por %p58, %p59
    %p61 = scmp.ne.s32.totalorder %s47, %s48
    %p62 = scmp.eq.s32.totalorder %s19, 7
    %p63 = por %p61, %p62
    %p65 = scmp.ne.s32.totalorder %s48, %s64
    %p66 = scmp.eq.s32.totalorder %s19, 0
    %p67 = por %p65, %p66
    %s68 = ssub.s32 %s13, %s20
    %p69 = scmp.eq.s32.totalorder %s68, 0
    %s71 = sadd.s32 %s70, 1
    %s72 = scalar_select %p69, %s70, %s71
    %p75 = pneg %p69
    %p76 = scmp.eq.s32.totalorder %s13, 7
    %p77 = por %p75, %p76
    %p78 = scmp.ne.s32.totalorder %s70, %s73
    %p79 = scmp.eq.s32.totalorder %s13, 0
    %p80 = por %p78, %p79
    %p81 = scmp.ne.s32.totalorder %s70, %s73
    %p82 = scmp.eq.s32.totalorder %s18, 7
    %p83 = por %p81, %p82
    %p84 = scmp.ne.s32.totalorder %s73, %s74
    %p85 = scmp.eq.s32.totalorder %s18, 0
    %p86 = por %p84, %p85
    %p87 = scmp.ne.s32.totalorder %s73, %s74
    %p88 = scmp.eq.s32.totalorder %s19, 7
    %p89 = por %p87, %p88
    %p91 = scmp.ne.s32.totalorder %s74, %s90
    %p92 = scmp.eq.s32.totalorder %s19, 0
    %p93 = por %p91, %p92
    %s95 = sadd.s32 %s94, 1
    %p98 = scmp.eq.s32.totalorder %s13, 7
    %p99 = scmp.ne.s32.totalorder %s94, %s96
    %p100 = scmp.eq.s32.totalorder %s13, 0
    %p101 = por %p99, %p100
    %p102 = scmp.ne.s32.totalorder %s94, %s96
    %p103 = scmp.eq.s32.totalorder %s18, 7
    %p104 = por %p102, %p103
    %p105 = scmp.ne.s32.totalorder %s96, %s97
    %p106 = scmp.eq.s32.totalorder %s18, 0
    %p107 = por %p105, %p106
    %p108 = scmp.ne.s32.totalorder %s96, %s97
    %p109 = scmp.eq.s32.totalorder %s19, 7
    %p110 = por %p108, %p109
    %p112 = scmp.ne.s32.totalorder %s97, %s111
    %p113 = scmp.eq.s32.totalorder %s19, 0
    %p114 = por %p112, %p113
    %s115 = ssub.s32 %s13, %s20
    %p116 = scmp.eq.s32.totalorder %s115, 0
    %s118 = sadd.s32 %s117, 1
    %s119 = scalar_select %p116, %s117, %s118
    %p122 = pneg %p116
    %p123 = scmp.eq.s32.totalorder %s13, 7
    %p124 = por %p122, %p123
    %p125 = scmp.ne.s32.totalorder %s117, %s120
    %p126 = scmp.eq.s32.totalorder %s13, 0
    %p127 = por %p125, %p126
    %p128 = scmp.ne.s32.totalorder %s117, %s120
    %p129 = scmp.eq.s32.totalorder %s18, 7
    %p130 = por %p128, %p129
    %p131 = scmp.ne.s32.totalorder %s120, %s121
    %p132 = scmp.eq.s32.totalorder %s18, 0
    %p133 = por %p131, %p132
    %p134 = scmp.ne.s32.totalorder %s120, %s121
    %p135 = scmp.eq.s32.totalorder %s19, 7
    %p136 = por %p134, %p135
    %p138 = scmp.ne.s32.totalorder %s121, %s137
    %p139 = scmp.eq.s32.totalorder %s19, 0
    %p140 = por %p138, %p139
    %s141 = ssub.s32 %s13, %s20
    %p142 = scmp.eq.s32.totalorder %s141, 0
    %s144 = sadd.s32 %s143, 1
    %s145 = scalar_select %p142, %s143, %s144
    %p148 = pneg %p142
    %p149 = scmp.eq.s32.totalorder %s13, 7
    %p150 = por %p148, %p149
    %p151 = scmp.ne.s32.totalorder %s143, %s146
    %p152 = scmp.eq.s32.totalorder %s13, 0
    %p153 = por %p151, %p152
    %p154 = scmp.ne.s32.totalorder %s143, %s146
    %p155 = scmp.eq.s32.totalorder %s18, 7
    %p156 = por %p154, %p155
    %p157 = scmp.ne.s32.totalorder %s146, %s147
    %p158 = scmp.eq.s32.totalorder %s18, 0
    %p159 = por %p157, %p158
    %p160 = scmp.ne.s32.totalorder %s146, %s147
    %p161 = scmp.eq.s32.totalorder %s19, 7
    %p162 = por %p160, %p161
    %p164 = scmp.ne.s32.totalorder %s147, %s163
    %p165 = scmp.eq.s32.totalorder %s19, 0
    %p166 = por %p164, %p165
    %p167 = scmp.le.s32.totalorder 1, %s13
    %p168 = scmp.lt.s32.totalorder %s13, 9
    %p169 = pnand %p167, %p168
    %p170 = pneg %p169
    // Predicated region
    $region9: #{tpu_custom_call.1} parent=5 // pred_check
      _
    $region10: #{tpu_custom_call.1} parent=5 // pred_check_branch
      %172 = sbr.rel (%p169) target = $region12
    $region11: #{tpu_custom_call.1} parent=5 // pred_region
      %s173 = ssub.s32 %s13, 1
      // Predicated region
      $region13: #{tpu_custom_call.1} parent=11 // pred_check
        %p174 = pneg %p34
      $region14: #{tpu_custom_call.1} parent=11 // pred_check_branch
        %176 = sbr.rel (%p174) target = $region16
      $region15: #{tpu_custom_call.1} parent=11 // pred_region
        _
      $region16: #{tpu_custom_call.1} parent=11 // pred_fallthru
        _
      // Predicated region
      $region17: #{tpu_custom_call.1} parent=11 // pred_check
        %p177 = pneg %p107
      $region18: #{tpu_custom_call.1} parent=11 // pred_check_branch
        %179 = sbr.rel (%p177) target = $region20
      $region19: #{tpu_custom_call.1} parent=11 // pred_region
        _
      $region20: #{tpu_custom_call.1} parent=11 // pred_fallthru
        _
    $region12: #{tpu_custom_call.1} parent=5 // pred_fallthru
      _
    %p180 = scmp.lt.s32.totalorder %s13, 8
    // Predicated region
    $region21: #{tpu_custom_call.1} parent=5 // pred_check
      %p181 = pneg %p180
    $region22: #{tpu_custom_call.1} parent=5 // pred_check_branch
      %183 = sbr.rel (%p181) target = $region24
    $region23: #{tpu_custom_call.1} parent=5 // pred_region
      // Predicated region
      $region25: #{tpu_custom_call.1} parent=23 // pred_check
        %p184 = pneg %p54
      $region26: #{tpu_custom_call.1} parent=23 // pred_check_branch
        %186 = sbr.rel (%p184) target = $region28
      $region27: #{tpu_custom_call.1} parent=23 // pred_region
        %s187 = smul.u32 32, %s13
        %p188 = scmp.lt.s32.totalorder %s187, 255
        %s189 = scalar_select %p188, %s187, 255
        %s190 = smul.addr %s189, 8
        %s191 = scalar_lea.vmem %s1, %s190
        %s192 = smul.u32 32, %s13
      $region28: #{tpu_custom_call.1} parent=23 // pred_fallthru
        _
      // Predicated region
      $region29: #{tpu_custom_call.1} parent=23 // pred_check
        %p193 = pneg %p80
      $region30: #{tpu_custom_call.1} parent=23 // pred_check_branch
        %195 = sbr.rel (%p193) target = $region32
      $region31: #{tpu_custom_call.1} parent=23 // pred_region
        %s196 = smul.u32 32, %s13
        %p197 = scmp.lt.s32.totalorder %s196, 255
        %s198 = scalar_select %p197, %s196, 255
        %s199 = smul.addr %s198, 8
        %s200 = scalar_lea.vmem %s2, %s199
        %s201 = smul.u32 32, %s13
      $region32: #{tpu_custom_call.1} parent=23 // pred_fallthru
        _
    $region24: #{tpu_custom_call.1} parent=5 // pred_fallthru
      _
    %p202 = scmp.le.s32.totalorder 1, %s13
    %p203 = scmp.lt.s32.totalorder %s13, 9
    %p204 = pnand %p202, %p203
    %p205 = pneg %p204
    // Predicated region
    $region33: #{tpu_custom_call.1} parent=5 // pred_check
      _
    $region34: #{tpu_custom_call.1} parent=5 // pred_check_branch
      %207 = sbr.rel (%p204) target = $region36
    $region35: #{tpu_custom_call.1} parent=5 // pred_region
      %s208 = ssub.s32 %s13, 1
      %p209 = pneg %p34
      %p210 = pneg %p31
      %s211 = smul.u32 32, %s18
      %p212 = scmp.lt.s32.totalorder %s211, 255
      %s213 = scalar_select %p212, %s211, 255
      %s214 = smul.addr %s213, 8
      %s215 = scalar_lea.vmem %s1, %s214
      %p216 = pneg %p60
      %p217 = pneg %p57
      %s218 = smul.u32 32, %s18
      %p219 = scmp.lt.s32.totalorder %s218, 255
      %s220 = scalar_select %p219, %s218, 255
      %s221 = smul.addr %s220, 8
      %s222 = scalar_lea.vmem %s2, %s221
      %p223 = pneg %p86
      %p224 = pneg %p83
      %p225 = pneg %p107
      %p226 = pneg %p104
      %p227 = pneg %p133
      %p228 = pneg %p130
      %s229 = smul.u32 32, %s18
      %p230 = scmp.lt.s32.totalorder %s229, 255
      %s231 = scalar_select %p230, %s229, 255
      %s232 = smul.addr %s231, 8
      %s233 = scalar_lea.vmem %s4, %s232
      %p234 = pneg %p159
      %p235 = pneg %p156
      %s236 = smul.u32 32, %s18
      %p237 = scmp.lt.s32.totalorder %s236, 255
      %s238 = scalar_select %p237, %s236, 255
      %s239 = smul.addr %s238, 8
      %s240 = scalar_lea.vmem %s5, %s239
      %s241 = smul.u32 32, %s18
      %p242 = scmp.lt.s32.totalorder %s241, 255
      %s243 = scalar_select %p242, %s241, 255
      %s244 = smul.addr %s243, 8
      %s245 = scalar_lea.vmem %s1, %s244
      %s246 = smul.u32 32, %s18
      %s247 = smul.u32 32, %s18
      %p248 = scmp.lt.s32.totalorder %s247, 255
      %s249 = scalar_select %p248, %s247, 255
      %s250 = smul.addr %s249, 8
      %s251 = scalar_lea.vmem %s2, %s250
      %s252 = smul.u32 32, %s18
      %s253 = smul.u32 32, %s18
      %p254 = scmp.lt.s32.totalorder %s253, 255
      %s255 = scalar_select %p254, %s253, 255
      %s256 = smul.addr %s255, 8
      %s257 = scalar_lea.vmem %s4, %s256
      %s258 = smul.u32 32, %s18
      %s259 = smul.u32 32, %s18
      %p260 = scmp.lt.s32.totalorder %s259, 255
      %s261 = scalar_select %p260, %s259, 255
      %s262 = smul.addr %s261, 8
      %s263 = scalar_lea.vmem %s5, %s262
      %s264 = smul.u32 32, %s18
      %s265 = sld [smem:[#allocation2]]
      %v266 = vld [vmem:[%s251] sm:$0xff]
      %v267 = vld [vmem:[%s251 + $0x8] sm:$0xff]
      %v268 = vld [vmem:[%s251 + $0x10] sm:$0xff]
      %v269 = vld [vmem:[%s251 + $0x18] sm:$0xff]
      %v270 = vld [vmem:[%s251 + $0x20] sm:$0xff]
      %v271 = vld [vmem:[%s251 + $0x28] sm:$0xff]
      %v272 = vld [vmem:[%s251 + $0x30] sm:$0xff]
      %v273 = vld [vmem:[%s251 + $0x38] sm:$0xff]
      %v274 = vld [vmem:[%s251 + $0x40] sm:$0xff]
      %v275 = vld [vmem:[%s251 + $0x48] sm:$0xff]
      %v276 = vld [vmem:[%s251 + $0x50] sm:$0xff]
      %v277 = vld [vmem:[%s251 + $0x58] sm:$0xff]
      %v278 = vld [vmem:[%s251 + $0x60] sm:$0xff]
      %v279 = vld [vmem:[%s251 + $0x68] sm:$0xff]
      %v280 = vld [vmem:[%s251 + $0x70] sm:$0xff]
      %v281 = vld [vmem:[%s251 + $0x78] sm:$0xff]
      %v282 = vld [vmem:[%s251 + $0x80] sm:$0xff]
      %v283 = vld [vmem:[%s251 + $0x88] sm:$0xff]
      %v284 = vld [vmem:[%s251 + $0x90] sm:$0xff]
      %v285 = vld [vmem:[%s251 + $0x98] sm:$0xff]
      %v286 = vld [vmem:[%s251 + $0xa0] sm:$0xff]
      %v287 = vld [vmem:[%s251 + $0xa8] sm:$0xff]
      %v288 = vld [vmem:[%s251 + $0xb0] sm:$0xff]
      %v289 = vld [vmem:[%s251 + $0xb8] sm:$0xff]
      %v290 = vld [vmem:[%s251 + $0xc0] sm:$0xff]
      %v291 = vld [vmem:[%s251 + $0xc8] sm:$0xff]
      %v292 = vld [vmem:[%s251 + $0xd0] sm:$0xff]
      %v293 = vld [vmem:[%s251 + $0xd8] sm:$0xff]
      %v294 = vld [vmem:[%s251 + $0xe0] sm:$0xff]
      %v295 = vld [vmem:[%s251 + $0xe8] sm:$0xff]
      %v296 = vld [vmem:[%s251 + $0xf0] sm:$0xff]
      %v297 = vld [vmem:[%s251 + $0xf8] sm:$0xff]
      %v298 = vld [vmem:[%s3] sm:$0xff]
      %v299 = vld [vmem:[%s3 + $0x8] sm:$0xff]
      %v300 = vld [vmem:[%s3 + $0x10] sm:$0xff]
      %v301 = vld [vmem:[%s3 + $0x18] sm:$0xff]
      %vm302 = vcmask 261120
      %v304 = vsel %vm302, %v266, 0
      %v307 = vsel %vm302, %v267, 0
      %v310 = vsel %vm302, %v268, 0
      %v313 = vsel %vm302, %v269, 0
      %v316 = vsel %vm302, %v270, 0
      %v319 = vsel %vm302, %v271, 0
      %v322 = vsel %vm302, %v272, 0
      %v325 = vsel %vm302, %v273, 0
      %v328 = vsel %vm302, %v274, 0
      %v331 = vsel %vm302, %v275, 0
      %v334 = vsel %vm302, %v276, 0
      %v337 = vsel %vm302, %v277, 0
      %v340 = vsel %vm302, %v278, 0
      %v343 = vsel %vm302, %v279, 0
      %v346 = vsel %vm302, %v280, 0
      %v349 = vsel %vm302, %v281, 0
      %v352 = vsel %vm302, %v282, 0
      %v355 = vsel %vm302, %v283, 0
      %v358 = vsel %vm302, %v284, 0
      %v361 = vsel %vm302, %v285, 0
      %v364 = vsel %vm302, %v286, 0
      %v367 = vsel %vm302, %v287, 0
      %v370 = vsel %vm302, %v288, 0
      %v373 = vsel %vm302, %v289, 0
      %v376 = vsel %vm302, %v290, 0
      %v379 = vsel %vm302, %v291, 0
      %v382 = vsel %vm302, %v292, 0
      %v385 = vsel %vm302, %v293, 0
      %v388 = vsel %vm302, %v294, 0
      %v391 = vsel %vm302, %v295, 0
      %v394 = vsel %vm302, %v296, 0
      %v397 = vsel %vm302, %v297, 0
      %399 = vmatprep.subr.mxu0 0.0
      %400 = vmatpush1.msra.mxu0 %v298
      %401 = vmatprep.subr.mxu0 0.0
      %402 = vmatpush1.msra.mxu0 %v299
      %403 = vmatprep.subr.mxu0 0.0
      %404 = vmatpush1.msra.mxu0 %v300
      %405 = vmatprep.subr.mxu0 0.0
      %406 = vmatpush1.msra.mxu0 %v301
      %407 = vmatprep.subr.mxu0 0.0
      %408 = vmatpush1.msra.mxu0 0.0
      %409 = vmatprep.subr.mxu0 0.0
      %410 = vmatpush1.msra.mxu0 0.0
      %411 = vmatprep.subr.mxu0 0.0
      %412 = vmatpush1.msra.mxu0 0.0
      %413 = vmatprep.subr.mxu0 0.0
      %414 = vmatpush1.msra.mxu0 0.0
      %415 = vmatprep.subr.mxu0 0.0
      %416 = vmatpush1.msra.mxu0 0.0
      %417 = vmatprep.subr.mxu0 0.0
      %418 = vmatpush1.msra.mxu0 0.0
      %419 = vmatprep.subr.mxu0 0.0
      %420 = vmatpush1.msra.mxu0 0.0
      %421 = vmatprep.subr.mxu0 0.0
      %422 = vmatpush1.msra.mxu0 0.0
      %423 = vmatprep.subr.mxu0 0.0
      %424 = vmatpush1.msra.mxu0 0.0
      %425 = vmatprep.subr.mxu0 0.0
      %426 = vmatpush1.msra.mxu0 0.0
      %427 = vmatprep.subr.mxu0 0.0
      %428 = vmatpush1.msra.mxu0 0.0
      %429 = vmatprep.subr.mxu0 0.0
      %430 = vmatpush1.msra.mxu0 0.0
      %431 = vmatprep.subr.mxu0 0.0
      %432 = vmatpush1.msra.mxu0 0.0
      %433 = vmatprep.subr.mxu0 0.0
      %434 = vmatpush1.msra.mxu0 0.0
      %435 = vmatprep.subr.mxu0 0.0
      %436 = vmatpush1.msra.mxu0 0.0
      %437 = vmatprep.subr.mxu0 0.0
      %438 = vmatpush1.msra.mxu0 0.0
      %439 = vmatprep.subr.mxu0 0.0
      %440 = vmatpush1.msra.mxu0 0.0
      %441 = vmatprep.subr.mxu0 0.0
      %442 = vmatpush1.msra.mxu0 0.0
      %443 = vmatprep.subr.mxu0 0.0
      %444 = vmatpush1.msra.mxu0 0.0
      %445 = vmatprep.subr.mxu0 0.0
      %446 = vmatpush1.msra.mxu0 0.0
      %447 = vmatprep.subr.mxu0 0.0
      %448 = vmatpush1.msra.mxu0 0.0
      %449 = vmatprep.subr.mxu0 0.0
      %450 = vmatpush1.msra.mxu0 0.0
      %451 = vmatprep.subr.mxu0 0.0
      %452 = vmatpush1.msra.mxu0 0.0
      %453 = vmatprep.subr.mxu0 0.0
      %454 = vmatpush1.msra.mxu0 0.0
      %455 = vmatprep.subr.mxu0 0.0
      %456 = vmatpush1.msra.mxu0 0.0
      %457 = vmatprep.subr.mxu0 0.0
      %458 = vmatpush1.msra.mxu0 0.0
      %459 = vmatprep.subr.mxu0 0.0
      %460 = vmatpush1.msra.mxu0 0.0
      %461 = vmatprep.subr.mxu0 0.0
      %462 = vmatpush1.msra.mxu0 0.0
      %463 = vmatprep.mubr.f32.mxu0 0.0
      %464 = vmatmul.mubr.f32.gmra.mrb[0].mxu0 %v304
      %v465 = vpop.f32.mrb[0].mxu0
      %v466 = vadd.f32 0.0, %v465
      %v467 = vpop.f32.mrb[0].mxu0
      %468 = vmatprep.mubr.f32.mxu0 0.0
      %469 = vmatmul.mubr.f32.gmra.mrb[0].mxu0 %v307
      %v470 = vpop.f32.mrb[0].mxu0
      %v471 = vadd.f32 0.0, %v470
      %v472 = vpop.f32.mrb[0].mxu0
      %473 = vmatprep.mubr.f32.mxu0 0.0
      %474 = vmatmul.mubr.f32.gmra.mrb[0].mxu0 %v310
      %v475 = vpop.f32.mrb[0].mxu0
      %v476 = vadd.f32 0.0, %v475
      %v477 = vpop.f32.mrb[0].mxu0
      %478 = vmatprep.mubr.f32.mxu0 0.0
      %479 = vmatmul.mubr.f32.gmra.mrb[0].mxu0 %v313
      %v480 = vpop.f32.mrb[0].mxu0
      %v481 = vadd.f32 0.0, %v480
      %v482 = vpop.f32.mrb[0].mxu0
      %483 = vmatprep.mubr.f32.mxu0 0.0
      %484 = vmatmul.mubr.f32.gmra.mrb[0].mxu0 %v316
      %v485 = vpop.f32.mrb[0].mxu0
      %v486 = vadd.f32 0.0, %v485
      %v487 = vpop.f32.mrb[0].mxu0
      %488 = vmatprep.mubr.f32.mxu0 0.0
      %489 = vmatmul.mubr.f32.gmra.mrb[0].mxu0 %v319
      %v490 = vpop.f32.mrb[0].mxu0
      %v491 = vadd.f32 0.0, %v490
      %v492 = vpop.f32.mrb[0].mxu0
      %493 = vmatprep.mubr.f32.mxu0 0.0
      %494 = vmatmul.mubr.f32.gmra.mrb[0].mxu0 %v322
      %v495 = vpop.f32.mrb[0].mxu0
      %v496 = vadd.f32 0.0, %v495
      %v497 = vpop.f32.mrb[0].mxu0
      %498 = vmatprep.mubr.f32.mxu0 0.0
      %499 = vmatmul.mubr.f32.gmra.mrb[0].mxu0 %v325
      %v500 = vpop.f32.mrb[0].mxu0
      %v501 = vadd.f32 0.0, %v500
      %v502 = vpop.f32.mrb[0].mxu0
      %503 = vmatprep.mubr.f32.mxu0 0.0
      %504 = vmatmul.mubr.f32.gmra.mrb[0].mxu0 %v328
      %v505 = vpop.f32.mrb[0].mxu0
      %v506 = vadd.f32 0.0, %v505
      %v507 = vpop.f32.mrb[0].mxu0
      %508 = vmatprep.mubr.f32.mxu0 0.0
      %509 = vmatmul.mubr.f32.gmra.mrb[0].mxu0 %v331
      %v510 = vpop.f32.mrb[0].mxu0
      %v511 = vadd.f32 0.0, %v510
      %v512 = vpop.f32.mrb[0].mxu0
      %513 = vmatprep.mubr.f32.mxu0 0.0
      %514 = vmatmul.mubr.f32.gmra.mrb[0].mxu0 %v334
      %v515 = vpop.f32.mrb[0].mxu0
      %v516 = vadd.f32 0.0, %v515
      %v517 = vpop.f32.mrb[0].mxu0
      %518 = vmatprep.mubr.f32.mxu0 0.0
      %519 = vmatmul.mubr.f32.gmra.mrb[0].mxu0 %v337
      %v520 = vpop.f32.mrb[0].mxu0
      %v521 = vadd.f32 0.0, %v520
      %v522 = vpop.f32.mrb[0].mxu0
      %523 = vmatprep.mubr.f32.mxu0 0.0
      %524 = vmatmul.mubr.f32.gmra.mrb[0].mxu0 %v340
      %v525 = vpop.f32.mrb[0].mxu0
      %v526 = vadd.f32 0.0, %v525
      %v527 = vpop.f32.mrb[0].mxu0
      %528 = vmatprep.mubr.f32.mxu0 0.0
      %529 = vmatmul.mubr.f32.gmra.mrb[0].mxu0 %v343
      %v530 = vpop.f32.mrb[0].mxu0
      %v531 = vadd.f32 0.0, %v530
      %v532 = vpop.f32.mrb[0].mxu0
      %533 = vmatprep.mubr.f32.mxu0 0.0
      %534 = vmatmul.mubr.f32.gmra.mrb[0].mxu0 %v346
      %v535 = vpop.f32.mrb[0].mxu0
      %v536 = vadd.f32 0.0, %v535
      %v537 = vpop.f32.mrb[0].mxu0
      %538 = vmatprep.mubr.f32.mxu0 0.0
      %539 = vmatmul.mubr.f32.gmra.mrb[0].mxu0 %v349
      %v540 = vpop.f32.mrb[0].mxu0
      %v541 = vadd.f32 0.0, %v540
      %v542 = vpop.f32.mrb[0].mxu0
      %543 = vmatprep.mubr.f32.mxu0 0.0
      %544 = vmatmul.mubr.f32.gmra.mrb[0].mxu0 %v352
      %v545 = vpop.f32.mrb[0].mxu0
      %v546 = vadd.f32 0.0, %v545
      %v547 = vpop.f32.mrb[0].mxu0
      %548 = vmatprep.mubr.f32.mxu0 0.0
      %549 = vmatmul.mubr.f32.gmra.mrb[0].mxu0 %v355
      %v550 = vpop.f32.mrb[0].mxu0
      %v551 = vadd.f32 0.0, %v550
      %v552 = vpop.f32.mrb[0].mxu0
      %553 = vmatprep.mubr.f32.mxu0 0.0
      %554 = vmatmul.mubr.f32.gmra.mrb[0].mxu0 %v358
      %v555 = vpop.f32.mrb[0].mxu0
      %v556 = vadd.f32 0.0, %v555
      %v557 = vpop.f32.mrb[0].mxu0
      %558 = vmatprep.mubr.f32.mxu0 0.0
      %559 = vmatmul.mubr.f32.gmra.mrb[0].mxu0 %v361
      %v560 = vpop.f32.mrb[0].mxu0
      %v561 = vadd.f32 0.0, %v560
      %v562 = vpop.f32.mrb[0].mxu0
      %563 = vmatprep.mubr.f32.mxu0 0.0
      %564 = vmatmul.mubr.f32.gmra.mrb[0].mxu0 %v364
      %v565 = vpop.f32.mrb[0].mxu0
      %v566 = vadd.f32 0.0, %v565
      %v567 = vpop.f32.mrb[0].mxu0
      %568 = vmatprep.mubr.f32.mxu0 0.0
      %569 = vmatmul.mubr.f32.gmra.mrb[0].mxu0 %v367
      %v570 = vpop.f32.mrb[0].mxu0
      %v571 = vadd.f32 0.0, %v570
      %v572 = vpop.f32.mrb[0].mxu0
      %573 = vmatprep.mubr.f32.mxu0 0.0
      %574 = vmatmul.mubr.f32.gmra.mrb[0].mxu0 %v370
      %v575 = vpop.f32.mrb[0].mxu0
      %v576 = vadd.f32 0.0, %v575
      %v577 = vpop.f32.mrb[0].mxu0
      %578 = vmatprep.mubr.f32.mxu0 0.0
      %579 = vmatmul.mubr.f32.gmra.mrb[0].mxu0 %v373
      %v580 = vpop.f32.mrb[0].mxu0
      %v581 = vadd.f32 0.0, %v580
      %v582 = vpop.f32.mrb[0].mxu0
      %583 = vmatprep.mubr.f32.mxu0 0.0
      %584 = vmatmul.mubr.f32.gmra.mrb[0].mxu0 %v376
      %v585 = vpop.f32.mrb[0].mxu0
      %v586 = vadd.f32 0.0, %v585
      %v587 = vpop.f32.mrb[0].mxu0
      %588 = vmatprep.mubr.f32.mxu0 0.0
      %589 = vmatmul.mubr.f32.gmra.mrb[0].mxu0 %v379
      %v590 = vpop.f32.mrb[0].mxu0
      %v591 = vadd.f32 0.0, %v590
      %v592 = vpop.f32.mrb[0].mxu0
      %593 = vmatprep.mubr.f32.mxu0 0.0
      %594 = vmatmul.mubr.f32.gmra.mrb[0].mxu0 %v382
      %v595 = vpop.f32.mrb[0].mxu0
      %v596 = vadd.f32 0.0, %v595
      %v597 = vpop.f32.mrb[0].mxu0
      %598 = vmatprep.mubr.f32.mxu0 0.0
      %599 = vmatmul.mubr.f32.gmra.mrb[0].mxu0 %v385
      %v600 = vpop.f32.mrb[0].mxu0
      %v601 = vadd.f32 0.0, %v600
      %v602 = vpop.f32.mrb[0].mxu0
      %603 = vmatprep.mubr.f32.mxu0 0.0
      %604 = vmatmul.mubr.f32.gmra.mrb[0].mxu0 %v388
      %v605 = vpop.f32.mrb[0].mxu0
      %v606 = vadd.f32 0.0, %v605
      %v607 = vpop.f32.mrb[0].mxu0
      %608 = vmatprep.mubr.f32.mxu0 0.0
      %609 = vmatmul.mubr.f32.gmra.mrb[0].mxu0 %v391
      %v610 = vpop.f32.mrb[0].mxu0
      %v611 = vadd.f32 0.0, %v610
      %v612 = vpop.f32.mrb[0].mxu0
      %613 = vmatprep.mubr.f32.mxu0 0.0
      %614 = vmatmul.mubr.f32.gmra.mrb[0].mxu0 %v394
      %v615 = vpop.f32.mrb[0].mxu0
      %v616 = vadd.f32 0.0, %v615
      %v617 = vpop.f32.mrb[0].mxu0
      %618 = vmatprep.mubr.f32.mxu0 0.0
      %619 = vmatmul.mubr.f32.gmra.mrb[0].mxu0 %v397
      %v620 = vpop.f32.mrb[0].mxu0
      %v621 = vadd.f32 0.0, %v620
      %v622 = vpop.f32.mrb[0].mxu0
      %623 = vdwg.mxu0
      %624 = vst.msk [vmem:[%s263] sm:$0xff] %vm302, %v466
      %625 = vst.msk [vmem:[%s263 + $0x8] sm:$0xff] %vm302, %v471
      %626 = vst.msk [vmem:[%s263 + $0x10] sm:$0xff] %vm302, %v476
      %627 = vst.msk [vmem:[%s263 + $0x18] sm:$0xff] %vm302, %v481
      %628 = vst.msk [vmem:[%s263 + $0x20] sm:$0xff] %vm302, %v486
      %629 = vst.msk [vmem:[%s263 + $0x28] sm:$0xff] %vm302, %v491
      %630 = vst.msk [vmem:[%s263 + $0x30] sm:$0xff] %vm302, %v496
      %631 = vst.msk [vmem:[%s263 + $0x38] sm:$0xff] %vm302, %v501
      %632 = vst.msk [vmem:[%s263 + $0x40] sm:$0xff] %vm302, %v506
      %633 = vst.msk [vmem:[%s263 + $0x48] sm:$0xff] %vm302, %v511
      %634 = vst.msk [vmem:[%s263 + $0x50] sm:$0xff] %vm302, %v516
      %635 = vst.msk [vmem:[%s263 + $0x58] sm:$0xff] %vm302, %v521
      %636 = vst.msk [vmem:[%s263 + $0x60] sm:$0xff] %vm302, %v526
      %637 = vst.msk [vmem:[%s263 + $0x68] sm:$0xff] %vm302, %v531
      %638 = vst.msk [vmem:[%s263 + $0x70] sm:$0xff] %vm302, %v536
      %639 = vst.msk [vmem:[%s263 + $0x78] sm:$0xff] %vm302, %v541
      %640 = vst.msk [vmem:[%s263 + $0x80] sm:$0xff] %vm302, %v546
      %641 = vst.msk [vmem:[%s263 + $0x88] sm:$0xff] %vm302, %v551
      %642 = vst.msk [vmem:[%s263 + $0x90] sm:$0xff] %vm302, %v556
      %643 = vst.msk [vmem:[%s263 + $0x98] sm:$0xff] %vm302, %v561
      %644 = vst.msk [vmem:[%s263 + $0xa0] sm:$0xff] %vm302, %v566
      %645 = vst.msk [vmem:[%s263 + $0xa8] sm:$0xff] %vm302, %v571
      %646 = vst.msk [vmem:[%s263 + $0xb0] sm:$0xff] %vm302, %v576
      %647 = vst.msk [vmem:[%s263 + $0xb8] sm:$0xff] %vm302, %v581
      %648 = vst.msk [vmem:[%s263 + $0xc0] sm:$0xff] %vm302, %v586
      %649 = vst.msk [vmem:[%s263 + $0xc8] sm:$0xff] %vm302, %v591
      %650 = vst.msk [vmem:[%s263 + $0xd0] sm:$0xff] %vm302, %v596
      %651 = vst.msk [vmem:[%s263 + $0xd8] sm:$0xff] %vm302, %v601
      %652 = vst.msk [vmem:[%s263 + $0xe0] sm:$0xff] %vm302, %v606
      %653 = vst.msk [vmem:[%s263 + $0xe8] sm:$0xff] %vm302, %v611
      %654 = vst.msk [vmem:[%s263 + $0xf0] sm:$0xff] %vm302, %v616
      %655 = vst.msk [vmem:[%s263 + $0xf8] sm:$0xff] %vm302, %v621
      %v656 = vld [vmem:[%s245] sm:$0xff]
      %v657 = vld [vmem:[%s245 + $0x8] sm:$0xff]
      %v658 = vld [vmem:[%s245 + $0x10] sm:$0xff]
      %v659 = vld [vmem:[%s245 + $0x18] sm:$0xff]
      %v660 = vld [vmem:[%s245 + $0x20] sm:$0xff]
      %v661 = vld [vmem:[%s245 + $0x28] sm:$0xff]
      %v662 = vld [vmem:[%s245 + $0x30] sm:$0xff]
      %v663 = vld [vmem:[%s245 + $0x38] sm:$0xff]
      %v664 = vld [vmem:[%s245 + $0x40] sm:$0xff]
      %v665 = vld [vmem:[%s245 + $0x48] sm:$0xff]
      %v666 = vld [vmem:[%s245 + $0x50] sm:$0xff]
      %v667 = vld [vmem:[%s245 + $0x58] sm:$0xff]
      %v668 = vld [vmem:[%s245 + $0x60] sm:$0xff]
      %v669 = vld [vmem:[%s245 + $0x68] sm:$0xff]
      %v670 = vld [vmem:[%s245 + $0x70] sm:$0xff]
      %v671 = vld [vmem:[%s245 + $0x78] sm:$0xff]
      %v672 = vld [vmem:[%s245 + $0x80] sm:$0xff]
      %v673 = vld [vmem:[%s245 + $0x88] sm:$0xff]
      %v674 = vld [vmem:[%s245 + $0x90] sm:$0xff]
      %v675 = vld [vmem:[%s245 + $0x98] sm:$0xff]
      %v676 = vld [vmem:[%s245 + $0xa0] sm:$0xff]
      %v677 = vld [vmem:[%s245 + $0xa8] sm:$0xff]
      %v678 = vld [vmem:[%s245 + $0xb0] sm:$0xff]
      %v679 = vld [vmem:[%s245 + $0xb8] sm:$0xff]
      %v680 = vld [vmem:[%s245 + $0xc0] sm:$0xff]
      %v681 = vld [vmem:[%s245 + $0xc8] sm:$0xff]
      %v682 = vld [vmem:[%s245 + $0xd0] sm:$0xff]
      %v683 = vld [vmem:[%s245 + $0xd8] sm:$0xff]
      %v684 = vld [vmem:[%s245 + $0xe0] sm:$0xff]
      %v685 = vld [vmem:[%s245 + $0xe8] sm:$0xff]
      %v686 = vld [vmem:[%s245 + $0xf0] sm:$0xff]
      %v687 = vld [vmem:[%s245 + $0xf8] sm:$0xff]
      %v688 = vadd.f32 %v656, %v466
      %v689 = vadd.f32 %v657, %v471
      %v690 = vadd.f32 %v658, %v476
      %v691 = vadd.f32 %v659, %v481
      %v692 = vadd.f32 %v660, %v486
      %v693 = vadd.f32 %v661, %v491
      %v694 = vadd.f32 %v662, %v496
      %v695 = vadd.f32 %v663, %v501
      %v696 = vadd.f32 %v664, %v506
      %v697 = vadd.f32 %v665, %v511
      %v698 = vadd.f32 %v666, %v516
      %v699 = vadd.f32 %v667, %v521
      %v700 = vadd.f32 %v668, %v526
      %v701 = vadd.f32 %v669, %v531
      %v702 = vadd.f32 %v670, %v536
      %v703 = vadd.f32 %v671, %v541
      %v704 = vadd.f32 %v672, %v546
      %v705 = vadd.f32 %v673, %v551
      %v706 = vadd.f32 %v674, %v556
      %v707 = vadd.f32 %v675, %v561
      %v708 = vadd.f32 %v676, %v566
      %v709 = vadd.f32 %v677, %v571
      %v710 = vadd.f32 %v678, %v576
      %v711 = vadd.f32 %v679, %v581
      %v712 = vadd.f32 %v680, %v586
      %v713 = vadd.f32 %v681, %v591
      %v714 = vadd.f32 %v682, %v596
      %v715 = vadd.f32 %v683, %v601
      %v716 = vadd.f32 %v684, %v606
      %v717 = vadd.f32 %v685, %v611
      %v718 = vadd.f32 %v686, %v616
      %v719 = vadd.f32 %v687, %v621
      %v720 = vand.u32 2147483647, %v688
      %v721 = vand.u32 2147483647, %v689
      %v722 = vand.u32 2147483647, %v690
      %v723 = vand.u32 2147483647, %v691
      %v724 = vand.u32 2147483647, %v692
      %v725 = vand.u32 2147483647, %v693
      %v726 = vand.u32 2147483647, %v694
      %v727 = vand.u32 2147483647, %v695
      %v728 = vand.u32 2147483647, %v696
      %v729 = vand.u32 2147483647, %v697
      %v730 = vand.u32 2147483647, %v698
      %v731 = vand.u32 2147483647, %v699
      %v732 = vand.u32 2147483647, %v700
      %v733 = vand.u32 2147483647, %v701
      %v734 = vand.u32 2147483647, %v702
      %v735 = vand.u32 2147483647, %v703
      %v736 = vand.u32 2147483647, %v704
      %v737 = vand.u32 2147483647, %v705
      %v738 = vand.u32 2147483647, %v706
      %v739 = vand.u32 2147483647, %v707
      %v740 = vand.u32 2147483647, %v708
      %v741 = vand.u32 2147483647, %v709
      %v742 = vand.u32 2147483647, %v710
      %v743 = vand.u32 2147483647, %v711
      %v744 = vand.u32 2147483647, %v712
      %v745 = vand.u32 2147483647, %v713
      %v746 = vand.u32 2147483647, %v714
      %v747 = vand.u32 2147483647, %v715
      %v748 = vand.u32 2147483647, %v716
      %v749 = vand.u32 2147483647, %v717
      %v750 = vand.u32 2147483647, %v718
      %v751 = vand.u32 2147483647, %v719
      %v752 = vsel %vm302, %v720, 0.0
      %753 = vadd.xlane.f32.xlu0 %v752
      %v754 = vpop.xlane.xlu0 %753
      %v755 = vsel %vm302, %v721, 0.0
      %756 = vadd.xlane.f32.xlu0 %v755
      %v757 = vpop.xlane.xlu0 %756
      %v758 = vsel %vm302, %v722, 0.0
      %759 = vadd.xlane.f32.xlu0 %v758
      %v760 = vpop.xlane.xlu0 %759
      %v761 = vsel %vm302, %v723, 0.0
      %762 = vadd.xlane.f32.xlu0 %v761
      %v763 = vpop.xlane.xlu0 %762
      %v764 = vsel %vm302, %v724, 0.0
      %765 = vadd.xlane.f32.xlu0 %v764
      %v766 = vpop.xlane.xlu0 %765
      %v767 = vsel %vm302, %v725, 0.0
      %768 = vadd.xlane.f32.xlu0 %v767
      %v769 = vpop.xlane.xlu0 %768
      %v770 = vsel %vm302, %v726, 0.0
      %771 = vadd.xlane.f32.xlu0 %v770
      %v772 = vpop.xlane.xlu0 %771
      %v773 = vsel %vm302, %v727, 0.0
      %774 = vadd.xlane.f32.xlu0 %v773
      %v775 = vpop.xlane.xlu0 %774
      %v776 = vsel %vm302, %v728, 0.0
      %777 = vadd.xlane.f32.xlu0 %v776
      %v778 = vpop.xlane.xlu0 %777
      %v779 = vsel %vm302, %v729, 0.0
      %780 = vadd.xlane.f32.xlu0 %v779
      %v781 = vpop.xlane.xlu0 %780
      %v782 = vsel %vm302, %v730, 0.0
      %783 = vadd.xlane.f32.xlu0 %v782
      %v784 = vpop.xlane.xlu0 %783
      %v785 = vsel %vm302, %v731, 0.0
      %786 = vadd.xlane.f32.xlu0 %v785
      %v787 = vpop.xlane.xlu0 %786
      %v788 = vsel %vm302, %v732, 0.0
      %789 = vadd.xlane.f32.xlu0 %v788
      %v790 = vpop.xlane.xlu0 %789
      %v791 = vsel %vm302, %v733, 0.0
      %792 = vadd.xlane.f32.xlu0 %v791
      %v793 = vpop.xlane.xlu0 %792
      %v794 = vsel %vm302, %v734, 0.0
      %795 = vadd.xlane.f32.xlu0 %v794
      %v796 = vpop.xlane.xlu0 %795
      %v797 = vsel %vm302, %v735, 0.0
      %798 = vadd.xlane.f32.xlu0 %v797
      %v799 = vpop.xlane.xlu0 %798
      %v800 = vsel %vm302, %v736, 0.0
      %801 = vadd.xlane.f32.xlu0 %v800
      %v802 = vpop.xlane.xlu0 %801
      %v803 = vsel %vm302, %v737, 0.0
      %804 = vadd.xlane.f32.xlu0 %v803
      %v805 = vpop.xlane.xlu0 %804
      %v806 = vsel %vm302, %v738, 0.0
      %807 = vadd.xlane.f32.xlu0 %v806
      %v808 = vpop.xlane.xlu0 %807
      %v809 = vsel %vm302, %v739, 0.0
      %810 = vadd.xlane.f32.xlu0 %v809
      %v811 = vpop.xlane.xlu0 %810
      %v812 = vsel %vm302, %v740, 0.0
      %813 = vadd.xlane.f32.xlu0 %v812
      %v814 = vpop.xlane.xlu0 %813
      %v815 = vsel %vm302, %v741, 0.0
      %816 = vadd.xlane.f32.xlu0 %v815
      %v817 = vpop.xlane.xlu0 %816
      %v818 = vsel %vm302, %v742, 0.0
      %819 = vadd.xlane.f32.xlu0 %v818
      %v820 = vpop.xlane.xlu0 %819
      %v821 = vsel %vm302, %v743, 0.0
      %822 = vadd.xlane.f32.xlu0 %v821
      %v823 = vpop.xlane.xlu0 %822
      %v824 = vsel %vm302, %v744, 0.0
      %825 = vadd.xlane.f32.xlu0 %v824
      %v826 = vpop.xlane.xlu0 %825
      %v827 = vsel %vm302, %v745, 0.0
      %828 = vadd.xlane.f32.xlu0 %v827
      %v829 = vpop.xlane.xlu0 %828
      %v830 = vsel %vm302, %v746, 0.0
      %831 = vadd.xlane.f32.xlu0 %v830
      %v832 = vpop.xlane.xlu0 %831
      %v833 = vsel %vm302, %v747, 0.0
      %834 = vadd.xlane.f32.xlu0 %v833
      %v835 = vpop.xlane.xlu0 %834
      %v836 = vsel %vm302, %v748, 0.0
      %837 = vadd.xlane.f32.xlu0 %v836
      %v838 = vpop.xlane.xlu0 %837
      %v839 = vsel %vm302, %v749, 0.0
      %840 = vadd.xlane.f32.xlu0 %v839
      %v841 = vpop.xlane.xlu0 %840
      %v842 = vsel %vm302, %v750, 0.0
      %843 = vadd.xlane.f32.xlu0 %v842
      %v844 = vpop.xlane.xlu0 %843
      %v845 = vsel %vm302, %v751, 0.0
      %846 = vadd.xlane.f32.xlu0 %v845
      %v847 = vpop.xlane.xlu0 %846
      %v848 = vstv %s265
      %v849 = vsub.f32 %v848, %v754
      %v850 = vsub.f32 %v848, %v757
      %v851 = vsub.f32 %v848, %v760
      %v852 = vsub.f32 %v848, %v763
      %v853 = vsub.f32 %v848, %v766
      %v854 = vsub.f32 %v848, %v769
      %v855 = vsub.f32 %v848, %v772
      %v856 = vsub.f32 %v848, %v775
      %v857 = vsub.f32 %v848, %v778
      %v858 = vsub.f32 %v848, %v781
      %v859 = vsub.f32 %v848, %v784
      %v860 = vsub.f32 %v848, %v787
      %v861 = vsub.f32 %v848, %v790
      %v862 = vsub.f32 %v848, %v793
      %v863 = vsub.f32 %v848, %v796
      %v864 = vsub.f32 %v848, %v799
      %v865 = vsub.f32 %v848, %v802
      %v866 = vsub.f32 %v848, %v805
      %v867 = vsub.f32 %v848, %v808
      %v868 = vsub.f32 %v848, %v811
      %v869 = vsub.f32 %v848, %v814
      %v870 = vsub.f32 %v848, %v817
      %v871 = vsub.f32 %v848, %v820
      %v872 = vsub.f32 %v848, %v823
      %v873 = vsub.f32 %v848, %v826
      %v874 = vsub.f32 %v848, %v829
      %v875 = vsub.f32 %v848, %v832
      %v876 = vsub.f32 %v848, %v835
      %v877 = vsub.f32 %v848, %v838
      %v878 = vsub.f32 %v848, %v841
      %v879 = vsub.f32 %v848, %v844
      %v880 = vsub.f32 %v848, %v847
      %vm881 = vcmask 7168
      %882 = vst.msk [vmem:[%s257] sm:$0xff] %vm881, %v849
      %883 = vst.msk [vmem:[%s257 + $0x8] sm:$0xff] %vm881, %v850
      %884 = vst.msk [vmem:[%s257 + $0x10] sm:$0xff] %vm881, %v851
      %885 = vst.msk [vmem:[%s257 + $0x18] sm:$0xff] %vm881, %v852
      %886 = vst.msk [vmem:[%s257 + $0x20] sm:$0xff] %vm881, %v853
      %887 = vst.msk [vmem:[%s257 + $0x28] sm:$0xff] %vm881, %v854
      %888 = vst.msk [vmem:[%s257 + $0x30] sm:$0xff] %vm881, %v855
      %889 = vst.msk [vmem:[%s257 + $0x38] sm:$0xff] %vm881, %v856
      %890 = vst.msk [vmem:[%s257 + $0x40] sm:$0xff] %vm881, %v857
      %891 = vst.msk [vmem:[%s257 + $0x48] sm:$0xff] %vm881, %v858
      %892 = vst.msk [vmem:[%s257 + $0x50] sm:$0xff] %vm881, %v859
      %893 = vst.msk [vmem:[%s257 + $0x58] sm:$0xff] %vm881, %v860
      %894 = vst.msk [vmem:[%s257 + $0x60] sm:$0xff] %vm881, %v861
      %895 = vst.msk [vmem:[%s257 + $0x68] sm:$0xff] %vm881, %v862
      %896 = vst.msk [vmem:[%s257 + $0x70] sm:$0xff] %vm881, %v863
      %897 = vst.msk [vmem:[%s257 + $0x78] sm:$0xff] %vm881, %v864
      %898 = vst.msk [vmem:[%s257 + $0x80] sm:$0xff] %vm881, %v865
      %899 = vst.msk [vmem:[%s257 + $0x88] sm:$0xff] %vm881, %v866
      %900 = vst.msk [vmem:[%s257 + $0x90] sm:$0xff] %vm881, %v867
      %901 = vst.msk [vmem:[%s257 + $0x98] sm:$0xff] %vm881, %v868
      %902 = vst.msk [vmem:[%s257 + $0xa0] sm:$0xff] %vm881, %v869
      %903 = vst.msk [vmem:[%s257 + $0xa8] sm:$0xff] %vm881, %v870
      %904 = vst.msk [vmem:[%s257 + $0xb0] sm:$0xff] %vm881, %v871
      %905 = vst.msk [vmem:[%s257 + $0xb8] sm:$0xff] %vm881, %v872
      %906 = vst.msk [vmem:[%s257 + $0xc0] sm:$0xff] %vm881, %v873
      %907 = vst.msk [vmem:[%s257 + $0xc8] sm:$0xff] %vm881, %v874
      %908 = vst.msk [vmem:[%s257 + $0xd0] sm:$0xff] %vm881, %v875
      %909 = vst.msk [vmem:[%s257 + $0xd8] sm:$0xff] %vm881, %v876
      %910 = vst.msk [vmem:[%s257 + $0xe0] sm:$0xff] %vm881, %v877
      %911 = vst.msk [vmem:[%s257 + $0xe8] sm:$0xff] %vm881, %v878
      %912 = vst.msk [vmem:[%s257 + $0xf0] sm:$0xff] %vm881, %v879
      %913 = vst.msk [vmem:[%s257 + $0xf8] sm:$0xff] %vm881, %v880
      %s914 = smul.u32 32, %s18
      %p915 = scmp.lt.s32.totalorder %s914, 255
      %s916 = scalar_select %p915, %s914, 255
      %s917 = smul.addr %s916, 8
      %s918 = scalar_lea.vmem %s4, %s917
      %s919 = smul.u32 32, %s18
      %p920 = scmp.lt.s32.totalorder %s919, 255
      %s921 = scalar_select %p920, %s919, 255
      %s922 = smul.addr %s921, 8
      %s923 = scalar_lea.vmem %s5, %s922
      // Predicated region
      $region37: #{tpu_custom_call.1} parent=35 // pred_check
        %p924 = pneg %p130
      $region38: #{tpu_custom_call.1} parent=35 // pred_check_branch
        %926 = sbr.rel (%p924) target = $region40
      $region39: #{tpu_custom_call.1} parent=35 // pred_region
        %s927 = smul.u32 32, %s18
      $region40: #{tpu_custom_call.1} parent=35 // pred_fallthru
        _
      // Predicated region
      $region41: #{tpu_custom_call.1} parent=35 // pred_check
        %p928 = pneg %p156
      $region42: #{tpu_custom_call.1} parent=35 // pred_check_branch
        %930 = sbr.rel (%p928) target = $region44
      $region43: #{tpu_custom_call.1} parent=35 // pred_region
        %s931 = smul.u32 32, %s18
      $region44: #{tpu_custom_call.1} parent=35 // pred_fallthru
        _
    $region36: #{tpu_custom_call.1} parent=5 // pred_fallthru
      _
    %p932 = scmp.le.s32.totalorder 2, %s13
    // Predicated region
    $region45: #{tpu_custom_call.1} parent=5 // pred_check
      %p933 = pneg %p932
    $region46: #{tpu_custom_call.1} parent=5 // pred_check_branch
      %935 = sbr.rel (%p933) target = $region48
    $region47: #{tpu_custom_call.1} parent=5 // pred_region
      %s936 = ssub.s32 %s13, 2
      // Predicated region
      $region49: #{tpu_custom_call.1} parent=47 // pred_check
        %p937 = pneg %p136
      $region50: #{tpu_custom_call.1} parent=47 // pred_check_branch
        %939 = sbr.rel (%p937) target = $region52
      $region51: #{tpu_custom_call.1} parent=47 // pred_region
        %s940 = smul.u32 32, %s19
        %p941 = scmp.lt.s32.totalorder %s940, 255
        %s942 = scalar_select %p941, %s940, 255
        %s943 = smul.addr %s942, 8
        %s944 = scalar_lea.vmem %s4, %s943
      $region52: #{tpu_custom_call.1} parent=47 // pred_fallthru
        _
      // Predicated region
      $region53: #{tpu_custom_call.1} parent=47 // pred_check
        %p945 = pneg %p162
      $region54: #{tpu_custom_call.1} parent=47 // pred_check_branch
        %947 = sbr.rel (%p945) target = $region56
      $region55: #{tpu_custom_call.1} parent=47 // pred_region
        %s948 = smul.u32 32, %s19
        %p949 = scmp.lt.s32.totalorder %s948, 255
        %s950 = scalar_select %p949, %s948, 255
        %s951 = smul.addr %s950, 8
        %s952 = scalar_lea.vmem %s5, %s951
      $region56: #{tpu_custom_call.1} parent=47 // pred_fallthru
        _
    $region48: #{tpu_custom_call.1} parent=5 // pred_fallthru
      _
  $region6: #{tpu_custom_call.1} parent=0 // loop_footer
    %s17 = sadd.s32 1, %s13
  $region7: #{tpu_custom_call.1} parent=0 // loop_footer_branch
    %12 = sbr.rel target = $region3
  $region8: #{tpu_custom_call.1} parent=0 // loop_exit
    _

// kernel: tpu_custom_call.1
$region0: #{tpu_custom_call.1}
  #allocation0 [shape = 'u32[]', space=smem, size = 0x4, offset = 0x4, fixed_abs, tag = 'smem constant byte address 0x4 - core index']
  #allocation1 [shape = 'u32[144,128]{1,0:T(1,128)}', space=vmem, size = 0x12000, scoped, tag = 'internal scratch']
  #allocation2 [shape = 'f32[1]{0:T(128)S(6)}', space=smem, size = 0x200, scoped, tag = 'scoped memory for tpu_custom_call.1']
  %s0 = inlined_call_operand.<no memory space> [shape: f32[1], index: 0, kind: input, shape index: {}]
  %s1 = inlined_call_operand.vmem [shape: f32[2048,32], index: 1, kind: input, shape index: {}]
  %s2 = inlined_call_operand.vmem [shape: f32[2048,32], index: 2, kind: input, shape index: {}]
  %s3 = inlined_call_operand.vmem [shape: f32[32,32], index: 3, kind: input, shape index: {}]
  %s4 = inlined_call_operand.vmem [shape: f32[2048,1], index: 4, kind: output, shape index: {0}]
  %s5 = inlined_call_operand.vmem [shape: f32[2048,32], index: 5, kind: output, shape index: {1}]
  %6 = xla_tuple %s4, %s5
  %s7 = sld [smem:[#allocation0]]
  $region57: #{tpu_custom_call.1} parent=0
    _
  %s9 = ssub.s32 1, %s7
  %s10 = scalar_select 0, %s9, %s7
  %11 = sst [smem:[#allocation2]] %s0
  loop: start=0, step=1, limit=10
  $region2: #{tpu_custom_call.1} parent=0 // loop_pre_header
    _
  $region3: #{tpu_custom_call.1} parent=0 // loop_header
    %s13 = sphi 0, %s17
    %p14 = scmp.ge.s32.totalorder %s13, 10
    %s21 = sphi 0, %s21
    %s23 = sphi 0, %s21
    %s24 = sphi 0, %s23
    %s38 = sphi 0, %s24
    %s44 = sphi 0, %s46
    %s47 = sphi 0, %s44
    %s48 = sphi 0, %s47
    %s64 = sphi 0, %s48
    %s70 = sphi 0, %s72
    %s73 = sphi 0, %s70
    %s74 = sphi 0, %s73
    %s90 = sphi 0, %s74
    %s94 = sphi 0, %s94
    %s96 = sphi 0, %s94
    %s97 = sphi 0, %s96
    %s111 = sphi 0, %s97
    %s117 = sphi 0, %s119
    %s120 = sphi 0, %s117
    %s121 = sphi 0, %s120
    %s137 = sphi 0, %s121
    %s143 = sphi 0, %s145
    %s146 = sphi 0, %s143
    %s147 = sphi 0, %s146
    %s163 = sphi 0, %s147
  $region4: #{tpu_custom_call.1} parent=0 // loop_header_branch
    %16 = sbr.rel (%p14) target = $region8
  $region5: #{tpu_custom_call.1} parent=0 // loop_body
    %s18 = ssub.s32 %s13, 1
    %s19 = ssub.s32 %s13, 2
    %s20 = sadd.s32 %s13, 1
    %s22 = sadd.s32 %s21, 1
    %p25 = scmp.eq.s32.totalorder %s13, 7
    %p26 = scmp.ne.s32.totalorder %s21, %s23
    %p27 = scmp.eq.s32.totalorder %s13, 0
    %p28 = por %p26, %p27
    %p29 = scmp.ne.s32.totalorder %s21, %s23
    %p30 = scmp.eq.s32.totalorder %s18, 7
    %p31 = por %p29, %p30
    %p32 = scmp.ne.s32.totalorder %s23, %s24
    %p33 = scmp.eq.s32.totalorder %s18, 0
    %p34 = por %p32, %p33
    %p35 = scmp.ne.s32.totalorder %s23, %s24
    %p36 = scmp.eq.s32.totalorder %s19, 7
    %p37 = por %p35, %p36
    %p39 = scmp.ne.s32.totalorder %s24, %s38
    %p40 = scmp.eq.s32.totalorder %s19, 0
    %p41 = por %p39, %p40
    %s42 = ssub.s32 %s13, %s20
    %p43 = scmp.eq.s32.totalorder %s42, 0
    %s45 = sadd.s32 %s44, 1
    %s46 = scalar_select %p43, %s44, %s45
    %p49 = pneg %p43
    %p50 = scmp.eq.s32.totalorder %s13, 7
    %p51 = por %p49, %p50
    %p52 = scmp.ne.s32.totalorder %s44, %s47
    %p53 = scmp.eq.s32.totalorder %s13, 0
    %p54 = por %p52, %p53
    %p55 = scmp.ne.s32.totalorder %s44, %s47
    %p56 = scmp.eq.s32.totalorder %s18, 7
    %p57 = por %p55, %p56
    %p58 = scmp.ne.s32.totalorder %s47, %s48
    %p59 = scmp.eq.s32.totalorder %s18, 0
    %p60 = por %p58, %p59
    %p61 = scmp.ne.s32.totalorder %s47, %s48
    %p62 = scmp.eq.s32.totalorder %s19, 7
    %p63 = por %p61, %p62
    %p65 = scmp.ne.s32.totalorder %s48, %s64
    %p66 = scmp.eq.s32.totalorder %s19, 0
    %p67 = por %p65, %p66
    %s68 = ssub.s32 %s13, %s20
    %p69 = scmp.eq.s32.totalorder %s68, 0
    %s71 = sadd.s32 %s70, 1
    %s72 = scalar_select %p69, %s70, %s71
    %p75 = pneg %p69
    %p76 = scmp.eq.s32.totalorder %s13, 7
    %p77 = por %p75, %p76
    %p78 = scmp.ne.s32.totalorder %s70, %s73
    %p79 = scmp.eq.s32.totalorder %s13, 0
    %p80 = por %p78, %p79
    %p81 = scmp.ne.s32.totalorder %s70, %s73
    %p82 = scmp.eq.s32.totalorder %s18, 7
    %p83 = por %p81, %p82
    %p84 = scmp.ne.s32.totalorder %s73, %s74
    %p85 = scmp.eq.s32.totalorder %s18, 0
    %p86 = por %p84, %p85
    %p87 = scmp.ne.s32.totalorder %s73, %s74
    %p88 = scmp.eq.s32.totalorder %s19, 7
    %p89 = por %p87, %p88
    %p91 = scmp.ne.s32.totalorder %s74, %s90
    %p92 = scmp.eq.s32.totalorder %s19, 0
    %p93 = por %p91, %p92
    %s95 = sadd.s32 %s94, 1
    %p98 = scmp.eq.s32.totalorder %s13, 7
    %p99 = scmp.ne.s32.totalorder %s94, %s96
    %p100 = scmp.eq.s32.totalorder %s13, 0
    %p101 = por %p99, %p100
    %p102 = scmp.ne.s32.totalorder %s94, %s96
    %p103 = scmp.eq.s32.totalorder %s18, 7
    %p104 = por %p102, %p103
    %p105 = scmp.ne.s32.totalorder %s96, %s97
    %p106 = scmp.eq.s32.totalorder %s18, 0
    %p107 = por %p105, %p106
    %p108 = scmp.ne.s32.totalorder %s96, %s97
    %p109 = scmp.eq.s32.totalorder %s19, 7
    %p110 = por %p108, %p109
    %p112 = scmp.ne.s32.totalorder %s97, %s111
    %p113 = scmp.eq.s32.totalorder %s19, 0
    %p114 = por %p112, %p113
    %s115 = ssub.s32 %s13, %s20
    %p116 = scmp.eq.s32.totalorder %s115, 0
    %s118 = sadd.s32 %s117, 1
    %s119 = scalar_select %p116, %s117, %s118
    %p122 = pneg %p116
    %p123 = scmp.eq.s32.totalorder %s13, 7
    %p124 = por %p122, %p123
    %p125 = scmp.ne.s32.totalorder %s117, %s120
    %p126 = scmp.eq.s32.totalorder %s13, 0
    %p127 = por %p125, %p126
    %p128 = scmp.ne.s32.totalorder %s117, %s120
    %p129 = scmp.eq.s32.totalorder %s18, 7
    %p130 = por %p128, %p129
    %p131 = scmp.ne.s32.totalorder %s120, %s121
    %p132 = scmp.eq.s32.totalorder %s18, 0
    %p133 = por %p131, %p132
    %p134 = scmp.ne.s32.totalorder %s120, %s121
    %p135 = scmp.eq.s32.totalorder %s19, 7
    %p136 = por %p134, %p135
    %p138 = scmp.ne.s32.totalorder %s121, %s137
    %p139 = scmp.eq.s32.totalorder %s19, 0
    %p140 = por %p138, %p139
    %s141 = ssub.s32 %s13, %s20
    %p142 = scmp.eq.s32.totalorder %s141, 0
    %s144 = sadd.s32 %s143, 1
    %s145 = scalar_select %p142, %s143, %s144
    %p148 = pneg %p142
    %p149 = scmp.eq.s32.totalorder %s13, 7
    %p150 = por %p148, %p149
    %p151 = scmp.ne.s32.totalorder %s143, %s146
    %p152 = scmp.eq.s32.totalorder %s13, 0
    %p153 = por %p151, %p152
    %p154 = scmp.ne.s32.totalorder %s143, %s146
    %p155 = scmp.eq.s32.totalorder %s18, 7
    %p156 = por %p154, %p155
    %p157 = scmp.ne.s32.totalorder %s146, %s147
    %p158 = scmp.eq.s32.totalorder %s18, 0
    %p159 = por %p157, %p158
    %p160 = scmp.ne.s32.totalorder %s146, %s147
    %p161 = scmp.eq.s32.totalorder %s19, 7
    %p162 = por %p160, %p161
    %p164 = scmp.ne.s32.totalorder %s147, %s163
    %p165 = scmp.eq.s32.totalorder %s19, 0
    %p166 = por %p164, %p165
    %p167 = scmp.le.s32.totalorder 1, %s13
    %p168 = scmp.lt.s32.totalorder %s13, 9
    %p169 = pnand %p167, %p168
    %p170 = pneg %p169
    // Predicated region
    $region9: #{tpu_custom_call.1} parent=5 // pred_check
      _
    $region10: #{tpu_custom_call.1} parent=5 // pred_check_branch
      %172 = sbr.rel (%p169) target = $region12
    $region11: #{tpu_custom_call.1} parent=5 // pred_region
      %s173 = ssub.s32 %s13, 1
      // Predicated region
      $region13: #{tpu_custom_call.1} parent=11 // pred_check
        %p174 = pneg %p34
      $region14: #{tpu_custom_call.1} parent=11 // pred_check_branch
        %176 = sbr.rel (%p174) target = $region16
      $region15: #{tpu_custom_call.1} parent=11 // pred_region
        _
      $region16: #{tpu_custom_call.1} parent=11 // pred_fallthru
        _
      // Predicated region
      $region17: #{tpu_custom_call.1} parent=11 // pred_check
        %p177 = pneg %p107
      $region18: #{tpu_custom_call.1} parent=11 // pred_check_branch
        %179 = sbr.rel (%p177) target = $region20
      $region19: #{tpu_custom_call.1} parent=11 // pred_region
        _
      $region20: #{tpu_custom_call.1} parent=11 // pred_fallthru
        _
    $region12: #{tpu_custom_call.1} parent=5 // pred_fallthru
      _
    %p180 = scmp.lt.s32.totalorder %s13, 8
    // Predicated region
    $region21: #{tpu_custom_call.1} parent=5 // pred_check
      %p181 = pneg %p180
    $region22: #{tpu_custom_call.1} parent=5 // pred_check_branch
      %183 = sbr.rel (%p181) target = $region24
    $region23: #{tpu_custom_call.1} parent=5 // pred_region
      // Predicated region
      $region25: #{tpu_custom_call.1} parent=23 // pred_check
        %p184 = pneg %p54
      $region26: #{tpu_custom_call.1} parent=23 // pred_check_branch
        %186 = sbr.rel (%p184) target = $region28
      $region27: #{tpu_custom_call.1} parent=23 // pred_region
        %s187 = smul.u32 32, %s13
        %p188 = scmp.lt.s32.totalorder %s187, 255
        %s189 = scalar_select %p188, %s187, 255
        %s190 = smul.addr %s189, 8
        %s191 = scalar_lea.vmem %s1, %s190
        %s192 = smul.u32 32, %s13
      $region28: #{tpu_custom_call.1} parent=23 // pred_fallthru
        _
      // Predicated region
      $region29: #{tpu_custom_call.1} parent=23 // pred_check
        %p193 = pneg %p80
      $region30: #{tpu_custom_call.1} parent=23 // pred_check_branch
        %195 = sbr.rel (%p193) target = $region32
      $region31: #{tpu_custom_call.1} parent=23 // pred_region
        %s196 = smul.u32 32, %s13
        %p197 = scmp.lt.s32.totalorder %s196, 255
        %s198 = scalar_select %p197, %s196, 255
        %s199 = smul.addr %s198, 8
        %s200 = scalar_lea.vmem %s2, %s199
        %s201 = smul.u32 32, %s13
      $region32: #{tpu_custom_call.1} parent=23 // pred_fallthru
        _
    $region24: #{tpu_custom_call.1} parent=5 // pred_fallthru
      _
    %p202 = scmp.le.s32.totalorder 1, %s13
    %p203 = scmp.lt.s32.totalorder %s13, 9
    %p204 = pnand %p202, %p203
    %p205 = pneg %p204
    // Predicated region
    $region33: #{tpu_custom_call.1} parent=5 // pred_check
      _
    $region34: #{tpu_custom_call.1} parent=5 // pred_check_branch
      %207 = sbr.rel (%p204) target = $region36
    $region35: #{tpu_custom_call.1} parent=5 // pred_region
      %s208 = ssub.s32 %s13, 1
      %p209 = pneg %p34
      %p210 = pneg %p31
      %s211 = smul.u32 32, %s18
      %p212 = scmp.lt.s32.totalorder %s211, 255
      %s213 = scalar_select %p212, %s211, 255
      %s214 = smul.addr %s213, 8
      %s215 = scalar_lea.vmem %s1, %s214
      %p216 = pneg %p60
      %p217 = pneg %p57
      %s218 = smul.u32 32, %s18
      %p219 = scmp.lt.s32.totalorder %s218, 255
      %s220 = scalar_select %p219, %s218, 255
      %s221 = smul.addr %s220, 8
      %s222 = scalar_lea.vmem %s2, %s221
      %p223 = pneg %p86
      %p224 = pneg %p83
      %p225 = pneg %p107
      %p226 = pneg %p104
      %p227 = pneg %p133
      %p228 = pneg %p130
      %s229 = smul.u32 32, %s18
      %p230 = scmp.lt.s32.totalorder %s229, 255
      %s231 = scalar_select %p230, %s229, 255
      %s232 = smul.addr %s231, 8
      %s233 = scalar_lea.vmem %s4, %s232
      %p234 = pneg %p159
      %p235 = pneg %p156
      %s236 = smul.u32 32, %s18
      %p237 = scmp.lt.s32.totalorder %s236, 255
      %s238 = scalar_select %p237, %s236, 255
      %s239 = smul.addr %s238, 8
      %s240 = scalar_lea.vmem %s5, %s239
      %s241 = smul.u32 32, %s18
      %p242 = scmp.lt.s32.totalorder %s241, 255
      %s243 = scalar_select %p242, %s241, 255
      %s244 = smul.addr %s243, 8
      %s245 = scalar_lea.vmem %s1, %s244
      %s246 = smul.u32 32, %s18
      %s247 = smul.u32 32, %s18
      %p248 = scmp.lt.s32.totalorder %s247, 255
      %s249 = scalar_select %p248, %s247, 255
      %s250 = smul.addr %s249, 8
      %s251 = scalar_lea.vmem %s2, %s250
      %s252 = smul.u32 32, %s18
      %s253 = smul.u32 32, %s18
      %p254 = scmp.lt.s32.totalorder %s253, 255
      %s255 = scalar_select %p254, %s253, 255
      %s256 = smul.addr %s255, 8
      %s257 = scalar_lea.vmem %s4, %s256
      %s258 = smul.u32 32, %s18
      %s259 = smul.u32 32, %s18
      %p260 = scmp.lt.s32.totalorder %s259, 255
      %s261 = scalar_select %p260, %s259, 255
      %s262 = smul.addr %s261, 8
      %s263 = scalar_lea.vmem %s5, %s262
      %s264 = smul.u32 32, %s18
      %s265 = sld [smem:[#allocation2]]
      %v266 = vld [vmem:[%s251] sm:$0xff]
      %v267 = vld [vmem:[%s251 + $0x8] sm:$0xff]
      %v268 = vld [vmem:[%s251 + $0x10] sm:$0xff]
      %v269 = vld [vmem:[%s251 + $0x18] sm:$0xff]
      %v270 = vld [vmem:[%s251 + $0x20] sm:$0xff]
      %v271 = vld [vmem:[%s251 + $0x28] sm:$0xff]
      %v272 = vld [vmem:[%s251 + $0x30] sm:$0xff]
      %v273 = vld [vmem:[%s251 + $0x38] sm:$0xff]
      %v274 = vld [vmem:[%s251 + $0x40] sm:$0xff]
      %v275 = vld [vmem:[%s251 + $0x48] sm:$0xff]
      %v276 = vld [vmem:[%s251 + $0x50] sm:$0xff]
      %v277 = vld [vmem:[%s251 + $0x58] sm:$0xff]
      %v278 = vld [vmem:[%s251 + $0x60] sm:$0xff]
      %v279 = vld [vmem:[%s251 + $0x68] sm:$0xff]
      %v280 = vld [vmem:[%s251 + $0x70] sm:$0xff]
      %v281 = vld [vmem:[%s251 + $0x78] sm:$0xff]
      %v282 = vld [vmem:[%s251 + $0x80] sm:$0xff]
      %v283 = vld [vmem:[%s251 + $0x88] sm:$0xff]
      %v284 = vld [vmem:[%s251 + $0x90] sm:$0xff]
      %v285 = vld [vmem:[%s251 + $0x98] sm:$0xff]
      %v286 = vld [vmem:[%s251 + $0xa0] sm:$0xff]
      %v287 = vld [vmem:[%s251 + $0xa8] sm:$0xff]
      %v288 = vld [vmem:[%s251 + $0xb0] sm:$0xff]
      %v289 = vld [vmem:[%s251 + $0xb8] sm:$0xff]
      %v290 = vld [vmem:[%s251 + $0xc0] sm:$0xff]
      %v291 = vld [vmem:[%s251 + $0xc8] sm:$0xff]
      %v292 = vld [vmem:[%s251 + $0xd0] sm:$0xff]
      %v293 = vld [vmem:[%s251 + $0xd8] sm:$0xff]
      %v294 = vld [vmem:[%s251 + $0xe0] sm:$0xff]
      %v295 = vld [vmem:[%s251 + $0xe8] sm:$0xff]
      %v296 = vld [vmem:[%s251 + $0xf0] sm:$0xff]
      %v297 = vld [vmem:[%s251 + $0xf8] sm:$0xff]
      %v298 = vld [vmem:[%s3] sm:$0xff]
      %v299 = vld [vmem:[%s3 + $0x8] sm:$0xff]
      %v300 = vld [vmem:[%s3 + $0x10] sm:$0xff]
      %v301 = vld [vmem:[%s3 + $0x18] sm:$0xff]
      %vm302 = vcmask 261120
      %v304 = vsel %vm302, %v266, 0
      %v307 = vsel %vm302, %v267, 0
      %v310 = vsel %vm302, %v268, 0
      %v313 = vsel %vm302, %v269, 0
      %v316 = vsel %vm302, %v270, 0
      %v319 = vsel %vm302, %v271, 0
      %v322 = vsel %vm302, %v272, 0
      %v325 = vsel %vm302, %v273, 0
      %v328 = vsel %vm302, %v274, 0
      %v331 = vsel %vm302, %v275, 0
      %v334 = vsel %vm302, %v276, 0
      %v337 = vsel %vm302, %v277, 0
      %v340 = vsel %vm302, %v278, 0
      %v343 = vsel %vm302, %v279, 0
      %v346 = vsel %vm302, %v280, 0
      %v349 = vsel %vm302, %v281, 0
      %v352 = vsel %vm302, %v282, 0
      %v355 = vsel %vm302, %v283, 0
      %v358 = vsel %vm302, %v284, 0
      %v361 = vsel %vm302, %v285, 0
      %v364 = vsel %vm302, %v286, 0
      %v367 = vsel %vm302, %v287, 0
      %v370 = vsel %vm302, %v288, 0
      %v373 = vsel %vm302, %v289, 0
      %v376 = vsel %vm302, %v290, 0
      %v379 = vsel %vm302, %v291, 0
      %v382 = vsel %vm302, %v292, 0
      %v385 = vsel %vm302, %v293, 0
      %v388 = vsel %vm302, %v294, 0
      %v391 = vsel %vm302, %v295, 0
      %v394 = vsel %vm302, %v296, 0
      %v397 = vsel %vm302, %v297, 0
      %399 = vmatprep.subr.mxu0 0.0
      %400 = vmatpush1.msra.mxu0 %v298
      %401 = vmatprep.subr.mxu0 0.0
      %402 = vmatpush1.msra.mxu0 %v299
      %403 = vmatprep.subr.mxu0 0.0
      %404 = vmatpush1.msra.mxu0 %v300
      %405 = vmatprep.subr.mxu0 0.0
      %406 = vmatpush1.msra.mxu0 %v301
      %407 = vmatprep.subr.mxu0 0.0
      %408 = vmatpush1.msra.mxu0 0.0
      %409 = vmatprep.subr.mxu0 0.0
      %410 = vmatpush1.msra.mxu0 0.0
      %411 = vmatprep.subr.mxu0 0.0
      %412 = vmatpush1.msra.mxu0 0.0
      %413 = vmatprep.subr.mxu0 0.0
      %414 = vmatpush1.msra.mxu0 0.0
      %415 = vmatprep.subr.mxu0 0.0
      %416 = vmatpush1.msra.mxu0 0.0
      %417 = vmatprep.subr.mxu0 0.0
      %418 = vmatpush1.msra.mxu0 0.0
      %419 = vmatprep.subr.mxu0 0.0
      %420 = vmatpush1.msra.mxu0 0.0
      %421 = vmatprep.subr.mxu0 0.0
      %422 = vmatpush1.msra.mxu0 0.0
      %423 = vmatprep.subr.mxu0 0.0
      %424 = vmatpush1.msra.mxu0 0.0
      %425 = vmatprep.subr.mxu0 0.0
      %426 = vmatpush1.msra.mxu0 0.0
      %427 = vmatprep.subr.mxu0 0.0
      %428 = vmatpush1.msra.mxu0 0.0
      %429 = vmatprep.subr.mxu0 0.0
      %430 = vmatpush1.msra.mxu0 0.0
      %431 = vmatprep.subr.mxu0 0.0
      %432 = vmatpush1.msra.mxu0 0.0
      %433 = vmatprep.subr.mxu0 0.0
      %434 = vmatpush1.msra.mxu0 0.0
      %435 = vmatprep.subr.mxu0 0.0
      %436 = vmatpush1.msra.mxu0 0.0
      %437 = vmatprep.subr.mxu0 0.0
      %438 = vmatpush1.msra.mxu0 0.0
      %439 = vmatprep.subr.mxu0 0.0
      %440 = vmatpush1.msra.mxu0 0.0
      %441 = vmatprep.subr.mxu0 0.0
      %442 = vmatpush1.msra.mxu0 0.0
      %443 = vmatprep.subr.mxu0 0.0
      %444 = vmatpush1.msra.mxu0 0.0
      %445 = vmatprep.subr.mxu0 0.0
      %446 = vmatpush1.msra.mxu0 0.0
      %447 = vmatprep.subr.mxu0 0.0
      %448 = vmatpush1.msra.mxu0 0.0
      %449 = vmatprep.subr.mxu0 0.0
      %450 = vmatpush1.msra.mxu0 0.0
      %451 = vmatprep.subr.mxu0 0.0
      %452 = vmatpush1.msra.mxu0 0.0
      %453 = vmatprep.subr.mxu0 0.0
      %454 = vmatpush1.msra.mxu0 0.0
      %455 = vmatprep.subr.mxu0 0.0
      %456 = vmatpush1.msra.mxu0 0.0
      %457 = vmatprep.subr.mxu0 0.0
      %458 = vmatpush1.msra.mxu0 0.0
      %459 = vmatprep.subr.mxu0 0.0
      %460 = vmatpush1.msra.mxu0 0.0
      %461 = vmatprep.subr.mxu0 0.0
      %462 = vmatpush1.msra.mxu0 0.0
      %463 = vmatprep.mubr.f32.mxu0 0.0
      %464 = vmatmul.mubr.f32.gmra.mrb[0].mxu0 %v304
      %v465 = vpop.f32.mrb[0].mxu0
      %v466 = vadd.f32 0.0, %v465
      %v467 = vpop.f32.mrb[0].mxu0
      %468 = vmatprep.mubr.f32.mxu0 0.0
      %469 = vmatmul.mubr.f32.gmra.mrb[0].mxu0 %v307
      %v470 = vpop.f32.mrb[0].mxu0
      %v471 = vadd.f32 0.0, %v470
      %v472 = vpop.f32.mrb[0].mxu0
      %473 = vmatprep.mubr.f32.mxu0 0.0
      %474 = vmatmul.mubr.f32.gmra.mrb[0].mxu0 %v310
      %v475 = vpop.f32.mrb[0].mxu0
      %v476 = vadd.f32 0.0, %v475
      %v477 = vpop.f32.mrb[0].mxu0
      %478 = vmatprep.mubr.f32.mxu0 0.0
      %479 = vmatmul.mubr.f32.gmra.mrb[0].mxu0 %v313
      %v480 = vpop.f32.mrb[0].mxu0
      %v481 = vadd.f32 0.0, %v480
      %v482 = vpop.f32.mrb[0].mxu0
      %483 = vmatprep.mubr.f32.mxu0 0.0
      %484 = vmatmul.mubr.f32.gmra.mrb[0].mxu0 %v316
      %v485 = vpop.f32.mrb[0].mxu0
      %v486 = vadd.f32 0.0, %v485
      %v487 = vpop.f32.mrb[0].mxu0
      %488 = vmatprep.mubr.f32.mxu0 0.0
      %489 = vmatmul.mubr.f32.gmra.mrb[0].mxu0 %v319
      %v490 = vpop.f32.mrb[0].mxu0
      %v491 = vadd.f32 0.0, %v490
      %v492 = vpop.f32.mrb[0].mxu0
      %493 = vmatprep.mubr.f32.mxu0 0.0
      %494 = vmatmul.mubr.f32.gmra.mrb[0].mxu0 %v322
      %v495 = vpop.f32.mrb[0].mxu0
      %v496 = vadd.f32 0.0, %v495
      %v497 = vpop.f32.mrb[0].mxu0
      %498 = vmatprep.mubr.f32.mxu0 0.0
      %499 = vmatmul.mubr.f32.gmra.mrb[0].mxu0 %v325
      %v500 = vpop.f32.mrb[0].mxu0
      %v501 = vadd.f32 0.0, %v500
      %v502 = vpop.f32.mrb[0].mxu0
      %503 = vmatprep.mubr.f32.mxu0 0.0
      %504 = vmatmul.mubr.f32.gmra.mrb[0].mxu0 %v328
      %v505 = vpop.f32.mrb[0].mxu0
      %v506 = vadd.f32 0.0, %v505
      %v507 = vpop.f32.mrb[0].mxu0
      %508 = vmatprep.mubr.f32.mxu0 0.0
      %509 = vmatmul.mubr.f32.gmra.mrb[0].mxu0 %v331
      %v510 = vpop.f32.mrb[0].mxu0
      %v511 = vadd.f32 0.0, %v510
      %v512 = vpop.f32.mrb[0].mxu0
      %513 = vmatprep.mubr.f32.mxu0 0.0
      %514 = vmatmul.mubr.f32.gmra.mrb[0].mxu0 %v334
      %v515 = vpop.f32.mrb[0].mxu0
      %v516 = vadd.f32 0.0, %v515
      %v517 = vpop.f32.mrb[0].mxu0
      %518 = vmatprep.mubr.f32.mxu0 0.0
      %519 = vmatmul.mubr.f32.gmra.mrb[0].mxu0 %v337
      %v520 = vpop.f32.mrb[0].mxu0
      %v521 = vadd.f32 0.0, %v520
      %v522 = vpop.f32.mrb[0].mxu0
      %523 = vmatprep.mubr.f32.mxu0 0.0
      %524 = vmatmul.mubr.f32.gmra.mrb[0].mxu0 %v340
      %v525 = vpop.f32.mrb[0].mxu0
      %v526 = vadd.f32 0.0, %v525
      %v527 = vpop.f32.mrb[0].mxu0
      %528 = vmatprep.mubr.f32.mxu0 0.0
      %529 = vmatmul.mubr.f32.gmra.mrb[0].mxu0 %v343
      %v530 = vpop.f32.mrb[0].mxu0
      %v531 = vadd.f32 0.0, %v530
      %v532 = vpop.f32.mrb[0].mxu0
      %533 = vmatprep.mubr.f32.mxu0 0.0
      %534 = vmatmul.mubr.f32.gmra.mrb[0].mxu0 %v346
      %v535 = vpop.f32.mrb[0].mxu0
      %v536 = vadd.f32 0.0, %v535
      %v537 = vpop.f32.mrb[0].mxu0
      %538 = vmatprep.mubr.f32.mxu0 0.0
      %539 = vmatmul.mubr.f32.gmra.mrb[0].mxu0 %v349
      %v540 = vpop.f32.mrb[0].mxu0
      %v541 = vadd.f32 0.0, %v540
      %v542 = vpop.f32.mrb[0].mxu0
      %543 = vmatprep.mubr.f32.mxu0 0.0
      %544 = vmatmul.mubr.f32.gmra.mrb[0].mxu0 %v352
      %v545 = vpop.f32.mrb[0].mxu0
      %v546 = vadd.f32 0.0, %v545
      %v547 = vpop.f32.mrb[0].mxu0
      %548 = vmatprep.mubr.f32.mxu0 0.0
      %549 = vmatmul.mubr.f32.gmra.mrb[0].mxu0 %v355
      %v550 = vpop.f32.mrb[0].mxu0
      %v551 = vadd.f32 0.0, %v550
      %v552 = vpop.f32.mrb[0].mxu0
      %553 = vmatprep.mubr.f32.mxu0 0.0
      %554 = vmatmul.mubr.f32.gmra.mrb[0].mxu0 %v358
      %v555 = vpop.f32.mrb[0].mxu0
      %v556 = vadd.f32 0.0, %v555
      %v557 = vpop.f32.mrb[0].mxu0
      %558 = vmatprep.mubr.f32.mxu0 0.0
      %559 = vmatmul.mubr.f32.gmra.mrb[0].mxu0 %v361
      %v560 = vpop.f32.mrb[0].mxu0
      %v561 = vadd.f32 0.0, %v560
      %v562 = vpop.f32.mrb[0].mxu0
      %563 = vmatprep.mubr.f32.mxu0 0.0
      %564 = vmatmul.mubr.f32.gmra.mrb[0].mxu0 %v364
      %v565 = vpop.f32.mrb[0].mxu0
      %v566 = vadd.f32 0.0, %v565
      %v567 = vpop.f32.mrb[0].mxu0
      %568 = vmatprep.mubr.f32.mxu0 0.0
      %569 = vmatmul.mubr.f32.gmra.mrb[0].mxu0 %v367
      %v570 = vpop.f32.mrb[0].mxu0
      %v571 = vadd.f32 0.0, %v570
      %v572 = vpop.f32.mrb[0].mxu0
      %573 = vmatprep.mubr.f32.mxu0 0.0
      %574 = vmatmul.mubr.f32.gmra.mrb[0].mxu0 %v370
      %v575 = vpop.f32.mrb[0].mxu0
      %v576 = vadd.f32 0.0, %v575
      %v577 = vpop.f32.mrb[0].mxu0
      %578 = vmatprep.mubr.f32.mxu0 0.0
      %579 = vmatmul.mubr.f32.gmra.mrb[0].mxu0 %v373
      %v580 = vpop.f32.mrb[0].mxu0
      %v581 = vadd.f32 0.0, %v580
      %v582 = vpop.f32.mrb[0].mxu0
      %583 = vmatprep.mubr.f32.mxu0 0.0
      %584 = vmatmul.mubr.f32.gmra.mrb[0].mxu0 %v376
      %v585 = vpop.f32.mrb[0].mxu0
      %v586 = vadd.f32 0.0, %v585
      %v587 = vpop.f32.mrb[0].mxu0
      %588 = vmatprep.mubr.f32.mxu0 0.0
      %589 = vmatmul.mubr.f32.gmra.mrb[0].mxu0 %v379
      %v590 = vpop.f32.mrb[0].mxu0
      %v591 = vadd.f32 0.0, %v590
      %v592 = vpop.f32.mrb[0].mxu0
      %593 = vmatprep.mubr.f32.mxu0 0.0
      %594 = vmatmul.mubr.f32.gmra.mrb[0].mxu0 %v382
      %v595 = vpop.f32.mrb[0].mxu0
      %v596 = vadd.f32 0.0, %v595
      %v597 = vpop.f32.mrb[0].mxu0
      %598 = vmatprep.mubr.f32.mxu0 0.0
      %599 = vmatmul.mubr.f32.gmra.mrb[0].mxu0 %v385
      %v600 = vpop.f32.mrb[0].mxu0
      %v601 = vadd.f32 0.0, %v600
      %v602 = vpop.f32.mrb[0].mxu0
      %603 = vmatprep.mubr.f32.mxu0 0.0
      %604 = vmatmul.mubr.f32.gmra.mrb[0].mxu0 %v388
      %v605 = vpop.f32.mrb[0].mxu0
      %v606 = vadd.f32 0.0, %v605
      %v607 = vpop.f32.mrb[0].mxu0
      %608 = vmatprep.mubr.f32.mxu0 0.0
      %609 = vmatmul.mubr.f32.gmra.mrb[0].mxu0 %v391
      %v610 = vpop.f32.mrb[0].mxu0
      %v611 = vadd.f32 0.0, %v610
      %v612 = vpop.f32.mrb[0].mxu0
      %613 = vmatprep.mubr.f32.mxu0 0.0
      %614 = vmatmul.mubr.f32.gmra.mrb[0].mxu0 %v394
      %v615 = vpop.f32.mrb[0].mxu0
      %v616 = vadd.f32 0.0, %v615
      %v617 = vpop.f32.mrb[0].mxu0
      %618 = vmatprep.mubr.f32.mxu0 0.0
      %619 = vmatmul.mubr.f32.gmra.mrb[0].mxu0 %v397
      %v620 = vpop.f32.mrb[0].mxu0
      %v621 = vadd.f32 0.0, %v620
      %v622 = vpop.f32.mrb[0].mxu0
      %623 = vdwg.mxu0
      %624 = vst.msk [vmem:[%s263] sm:$0xff] %vm302, %v466
      %625 = vst.msk [vmem:[%s263 + $0x8] sm:$0xff] %vm302, %v471
      %626 = vst.msk [vmem:[%s263 + $0x10] sm:$0xff] %vm302, %v476
      %627 = vst.msk [vmem:[%s263 + $0x18] sm:$0xff] %vm302, %v481
      %628 = vst.msk [vmem:[%s263 + $0x20] sm:$0xff] %vm302, %v486
      %629 = vst.msk [vmem:[%s263 + $0x28] sm:$0xff] %vm302, %v491
      %630 = vst.msk [vmem:[%s263 + $0x30] sm:$0xff] %vm302, %v496
      %631 = vst.msk [vmem:[%s263 + $0x38] sm:$0xff] %vm302, %v501
      %632 = vst.msk [vmem:[%s263 + $0x40] sm:$0xff] %vm302, %v506
      %633 = vst.msk [vmem:[%s263 + $0x48] sm:$0xff] %vm302, %v511
      %634 = vst.msk [vmem:[%s263 + $0x50] sm:$0xff] %vm302, %v516
      %635 = vst.msk [vmem:[%s263 + $0x58] sm:$0xff] %vm302, %v521
      %636 = vst.msk [vmem:[%s263 + $0x60] sm:$0xff] %vm302, %v526
      %637 = vst.msk [vmem:[%s263 + $0x68] sm:$0xff] %vm302, %v531
      %638 = vst.msk [vmem:[%s263 + $0x70] sm:$0xff] %vm302, %v536
      %639 = vst.msk [vmem:[%s263 + $0x78] sm:$0xff] %vm302, %v541
      %640 = vst.msk [vmem:[%s263 + $0x80] sm:$0xff] %vm302, %v546
      %641 = vst.msk [vmem:[%s263 + $0x88] sm:$0xff] %vm302, %v551
      %642 = vst.msk [vmem:[%s263 + $0x90] sm:$0xff] %vm302, %v556
      %643 = vst.msk [vmem:[%s263 + $0x98] sm:$0xff] %vm302, %v561
      %644 = vst.msk [vmem:[%s263 + $0xa0] sm:$0xff] %vm302, %v566
      %645 = vst.msk [vmem:[%s263 + $0xa8] sm:$0xff] %vm302, %v571
      %646 = vst.msk [vmem:[%s263 + $0xb0] sm:$0xff] %vm302, %v576
      %647 = vst.msk [vmem:[%s263 + $0xb8] sm:$0xff] %vm302, %v581
      %648 = vst.msk [vmem:[%s263 + $0xc0] sm:$0xff] %vm302, %v586
      %649 = vst.msk [vmem:[%s263 + $0xc8] sm:$0xff] %vm302, %v591
      %650 = vst.msk [vmem:[%s263 + $0xd0] sm:$0xff] %vm302, %v596
      %651 = vst.msk [vmem:[%s263 + $0xd8] sm:$0xff] %vm302, %v601
      %652 = vst.msk [vmem:[%s263 + $0xe0] sm:$0xff] %vm302, %v606
      %653 = vst.msk [vmem:[%s263 + $0xe8] sm:$0xff] %vm302, %v611
      %654 = vst.msk [vmem:[%s263 + $0xf0] sm:$0xff] %vm302, %v616
      %655 = vst.msk [vmem:[%s263 + $0xf8] sm:$0xff] %vm302, %v621
      %v656 = vld [vmem:[%s245] sm:$0xff]
      %v657 = vld [vmem:[%s245 + $0x8] sm:$0xff]
      %v658 = vld [vmem:[%s245 + $0x10] sm:$0xff]
      %v659 = vld [vmem:[%s245 + $0x18] sm:$0xff]
      %v660 = vld [vmem:[%s245 + $0x20] sm:$0xff]
      %v661 = vld [vmem:[%s245 + $0x28] sm:$0xff]
      %v662 = vld [vmem:[%s245 + $0x30] sm:$0xff]
      %v663 = vld [vmem:[%s245 + $0x38] sm:$0xff]
      %v664 = vld [vmem:[%s245 + $0x40] sm:$0xff]
      %v665 = vld [vmem:[%s245 + $0x48] sm:$0xff]
      %v666 = vld [vmem:[%s245 + $0x50] sm:$0xff]
      %v667 = vld [vmem:[%s245 + $0x58] sm:$0xff]
      %v668 = vld [vmem:[%s245 + $0x60] sm:$0xff]
      %v669 = vld [vmem:[%s245 + $0x68] sm:$0xff]
      %v670 = vld [vmem:[%s245 + $0x70] sm:$0xff]
      %v671 = vld [vmem:[%s245 + $0x78] sm:$0xff]
      %v672 = vld [vmem:[%s245 + $0x80] sm:$0xff]
      %v673 = vld [vmem:[%s245 + $0x88] sm:$0xff]
      %v674 = vld [vmem:[%s245 + $0x90] sm:$0xff]
      %v675 = vld [vmem:[%s245 + $0x98] sm:$0xff]
      %v676 = vld [vmem:[%s245 + $0xa0] sm:$0xff]
      %v677 = vld [vmem:[%s245 + $0xa8] sm:$0xff]
      %v678 = vld [vmem:[%s245 + $0xb0] sm:$0xff]
      %v679 = vld [vmem:[%s245 + $0xb8] sm:$0xff]
      %v680 = vld [vmem:[%s245 + $0xc0] sm:$0xff]
      %v681 = vld [vmem:[%s245 + $0xc8] sm:$0xff]
      %v682 = vld [vmem:[%s245 + $0xd0] sm:$0xff]
      %v683 = vld [vmem:[%s245 + $0xd8] sm:$0xff]
      %v684 = vld [vmem:[%s245 + $0xe0] sm:$0xff]
      %v685 = vld [vmem:[%s245 + $0xe8] sm:$0xff]
      %v686 = vld [vmem:[%s245 + $0xf0] sm:$0xff]
      %v687 = vld [vmem:[%s245 + $0xf8] sm:$0xff]
      %v688 = vadd.f32 %v656, %v466
      %v689 = vadd.f32 %v657, %v471
      %v690 = vadd.f32 %v658, %v476
      %v691 = vadd.f32 %v659, %v481
      %v692 = vadd.f32 %v660, %v486
      %v693 = vadd.f32 %v661, %v491
      %v694 = vadd.f32 %v662, %v496
      %v695 = vadd.f32 %v663, %v501
      %v696 = vadd.f32 %v664, %v506
      %v697 = vadd.f32 %v665, %v511
      %v698 = vadd.f32 %v666, %v516
      %v699 = vadd.f32 %v667, %v521
      %v700 = vadd.f32 %v668, %v526
      %v701 = vadd.f32 %v669, %v531
      %v702 = vadd.f32 %v670, %v536
      %v703 = vadd.f32 %v671, %v541
      %v704 = vadd.f32 %v672, %v546
      %v705 = vadd.f32 %v673, %v551
      %v706 = vadd.f32 %v674, %v556
      %v707 = vadd.f32 %v675, %v561
      %v708 = vadd.f32 %v676, %v566
      %v709 = vadd.f32 %v677, %v571
      %v710 = vadd.f32 %v678, %v576
      %v711 = vadd.f32 %v679, %v581
      %v712 = vadd.f32 %v680, %v586
      %v713 = vadd.f32 %v681, %v591
      %v714 = vadd.f32 %v682, %v596
      %v715 = vadd.f32 %v683, %v601
      %v716 = vadd.f32 %v684, %v606
      %v717 = vadd.f32 %v685, %v611
      %v718 = vadd.f32 %v686, %v616
      %v719 = vadd.f32 %v687, %v621
      %v720 = vand.u32 2147483647, %v688
      %v721 = vand.u32 2147483647, %v689
      %v722 = vand.u32 2147483647, %v690
      %v723 = vand.u32 2147483647, %v691
      %v724 = vand.u32 2147483647, %v692
      %v725 = vand.u32 2147483647, %v693
      %v726 = vand.u32 2147483647, %v694
      %v727 = vand.u32 2147483647, %v695
      %v728 = vand.u32 2147483647, %v696
      %v729 = vand.u32 2147483647, %v697
      %v730 = vand.u32 2147483647, %v698
      %v731 = vand.u32 2147483647, %v699
      %v732 = vand.u32 2147483647, %v700
      %v733 = vand.u32 2147483647, %v701
      %v734 = vand.u32 2147483647, %v702
      %v735 = vand.u32 2147483647, %v703
      %v736 = vand.u32 2147483647, %v704
      %v737 = vand.u32 2147483647, %v705
      %v738 = vand.u32 2147483647, %v706
      %v739 = vand.u32 2147483647, %v707
      %v740 = vand.u32 2147483647, %v708
      %v741 = vand.u32 2147483647, %v709
      %v742 = vand.u32 2147483647, %v710
      %v743 = vand.u32 2147483647, %v711
      %v744 = vand.u32 2147483647, %v712
      %v745 = vand.u32 2147483647, %v713
      %v746 = vand.u32 2147483647, %v714
      %v747 = vand.u32 2147483647, %v715
      %v748 = vand.u32 2147483647, %v716
      %v749 = vand.u32 2147483647, %v717
      %v750 = vand.u32 2147483647, %v718
      %v751 = vand.u32 2147483647, %v719
      %v752 = vsel %vm302, %v720, 0.0
      %753 = vadd.xlane.f32.xlu0 %v752
      %v754 = vpop.xlane.xlu0 %753
      %v755 = vsel %vm302, %v721, 0.0
      %756 = vadd.xlane.f32.xlu0 %v755
      %v757 = vpop.xlane.xlu0 %756
      %v758 = vsel %vm302, %v722, 0.0
      %759 = vadd.xlane.f32.xlu0 %v758
      %v760 = vpop.xlane.xlu0 %759
      %v761 = vsel %vm302, %v723, 0.0
      %762 = vadd.xlane.f32.xlu0 %v761
      %v763 = vpop.xlane.xlu0 %762
      %v764 = vsel %vm302, %v724, 0.0
      %765 = vadd.xlane.f32.xlu0 %v764
      %v766 = vpop.xlane.xlu0 %765
      %v767 = vsel %vm302, %v725, 0.0
      %768 = vadd.xlane.f32.xlu0 %v767
      %v769 = vpop.xlane.xlu0 %768
      %v770 = vsel %vm302, %v726, 0.0
      %771 = vadd.xlane.f32.xlu0 %v770
      %v772 = vpop.xlane.xlu0 %771
      %v773 = vsel %vm302, %v727, 0.0
      %774 = vadd.xlane.f32.xlu0 %v773
      %v775 = vpop.xlane.xlu0 %774
      %v776 = vsel %vm302, %v728, 0.0
      %777 = vadd.xlane.f32.xlu0 %v776
      %v778 = vpop.xlane.xlu0 %777
      %v779 = vsel %vm302, %v729, 0.0
      %780 = vadd.xlane.f32.xlu0 %v779
      %v781 = vpop.xlane.xlu0 %780
      %v782 = vsel %vm302, %v730, 0.0
      %783 = vadd.xlane.f32.xlu0 %v782
      %v784 = vpop.xlane.xlu0 %783
      %v785 = vsel %vm302, %v731, 0.0
      %786 = vadd.xlane.f32.xlu0 %v785
      %v787 = vpop.xlane.xlu0 %786
      %v788 = vsel %vm302, %v732, 0.0
      %789 = vadd.xlane.f32.xlu0 %v788
      %v790 = vpop.xlane.xlu0 %789
      %v791 = vsel %vm302, %v733, 0.0
      %792 = vadd.xlane.f32.xlu0 %v791
      %v793 = vpop.xlane.xlu0 %792
      %v794 = vsel %vm302, %v734, 0.0
      %795 = vadd.xlane.f32.xlu0 %v794
      %v796 = vpop.xlane.xlu0 %795
      %v797 = vsel %vm302, %v735, 0.0
      %798 = vadd.xlane.f32.xlu0 %v797
      %v799 = vpop.xlane.xlu0 %798
      %v800 = vsel %vm302, %v736, 0.0
      %801 = vadd.xlane.f32.xlu0 %v800
      %v802 = vpop.xlane.xlu0 %801
      %v803 = vsel %vm302, %v737, 0.0
      %804 = vadd.xlane.f32.xlu0 %v803
      %v805 = vpop.xlane.xlu0 %804
      %v806 = vsel %vm302, %v738, 0.0
      %807 = vadd.xlane.f32.xlu0 %v806
      %v808 = vpop.xlane.xlu0 %807
      %v809 = vsel %vm302, %v739, 0.0
      %810 = vadd.xlane.f32.xlu0 %v809
      %v811 = vpop.xlane.xlu0 %810
      %v812 = vsel %vm302, %v740, 0.0
      %813 = vadd.xlane.f32.xlu0 %v812
      %v814 = vpop.xlane.xlu0 %813
      %v815 = vsel %vm302, %v741, 0.0
      %816 = vadd.xlane.f32.xlu0 %v815
      %v817 = vpop.xlane.xlu0 %816
      %v818 = vsel %vm302, %v742, 0.0
      %819 = vadd.xlane.f32.xlu0 %v818
      %v820 = vpop.xlane.xlu0 %819
      %v821 = vsel %vm302, %v743, 0.0
      %822 = vadd.xlane.f32.xlu0 %v821
      %v823 = vpop.xlane.xlu0 %822
      %v824 = vsel %vm302, %v744, 0.0
      %825 = vadd.xlane.f32.xlu0 %v824
      %v826 = vpop.xlane.xlu0 %825
      %v827 = vsel %vm302, %v745, 0.0
      %828 = vadd.xlane.f32.xlu0 %v827
      %v829 = vpop.xlane.xlu0 %828
      %v830 = vsel %vm302, %v746, 0.0
      %831 = vadd.xlane.f32.xlu0 %v830
      %v832 = vpop.xlane.xlu0 %831
      %v833 = vsel %vm302, %v747, 0.0
      %834 = vadd.xlane.f32.xlu0 %v833
      %v835 = vpop.xlane.xlu0 %834
      %v836 = vsel %vm302, %v748, 0.0
      %837 = vadd.xlane.f32.xlu0 %v836
      %v838 = vpop.xlane.xlu0 %837
      %v839 = vsel %vm302, %v749, 0.0
      %840 = vadd.xlane.f32.xlu0 %v839
      %v841 = vpop.xlane.xlu0 %840
      %v842 = vsel %vm302, %v750, 0.0
      %843 = vadd.xlane.f32.xlu0 %v842
      %v844 = vpop.xlane.xlu0 %843
      %v845 = vsel %vm302, %v751, 0.0
      %846 = vadd.xlane.f32.xlu0 %v845
      %v847 = vpop.xlane.xlu0 %846
      %v848 = vstv %s265
      %v849 = vsub.f32 %v848, %v754
      %v850 = vsub.f32 %v848, %v757
      %v851 = vsub.f32 %v848, %v760
      %v852 = vsub.f32 %v848, %v763
      %v853 = vsub.f32 %v848, %v766
      %v854 = vsub.f32 %v848, %v769
      %v855 = vsub.f32 %v848, %v772
      %v856 = vsub.f32 %v848, %v775
      %v857 = vsub.f32 %v848, %v778
      %v858 = vsub.f32 %v848, %v781
      %v859 = vsub.f32 %v848, %v784
      %v860 = vsub.f32 %v848, %v787
      %v861 = vsub.f32 %v848, %v790
      %v862 = vsub.f32 %v848, %v793
      %v863 = vsub.f32 %v848, %v796
      %v864 = vsub.f32 %v848, %v799
      %v865 = vsub.f32 %v848, %v802
      %v866 = vsub.f32 %v848, %v805
      %v867 = vsub.f32 %v848, %v808
      %v868 = vsub.f32 %v848, %v811
      %v869 = vsub.f32 %v848, %v814
      %v870 = vsub.f32 %v848, %v817
      %v871 = vsub.f32 %v848, %v820
      %v872 = vsub.f32 %v848, %v823
      %v873 = vsub.f32 %v848, %v826
      %v874 = vsub.f32 %v848, %v829
      %v875 = vsub.f32 %v848, %v832
      %v876 = vsub.f32 %v848, %v835
      %v877 = vsub.f32 %v848, %v838
      %v878 = vsub.f32 %v848, %v841
      %v879 = vsub.f32 %v848, %v844
      %v880 = vsub.f32 %v848, %v847
      %vm881 = vcmask 7168
      %882 = vst.msk [vmem:[%s257] sm:$0xff] %vm881, %v849
      %883 = vst.msk [vmem:[%s257 + $0x8] sm:$0xff] %vm881, %v850
      %884 = vst.msk [vmem:[%s257 + $0x10] sm:$0xff] %vm881, %v851
      %885 = vst.msk [vmem:[%s257 + $0x18] sm:$0xff] %vm881, %v852
      %886 = vst.msk [vmem:[%s257 + $0x20] sm:$0xff] %vm881, %v853
      %887 = vst.msk [vmem:[%s257 + $0x28] sm:$0xff] %vm881, %v854
      %888 = vst.msk [vmem:[%s257 + $0x30] sm:$0xff] %vm881, %v855
      %889 = vst.msk [vmem:[%s257 + $0x38] sm:$0xff] %vm881, %v856
      %890 = vst.msk [vmem:[%s257 + $0x40] sm:$0xff] %vm881, %v857
      %891 = vst.msk [vmem:[%s257 + $0x48] sm:$0xff] %vm881, %v858
      %892 = vst.msk [vmem:[%s257 + $0x50] sm:$0xff] %vm881, %v859
      %893 = vst.msk [vmem:[%s257 + $0x58] sm:$0xff] %vm881, %v860
      %894 = vst.msk [vmem:[%s257 + $0x60] sm:$0xff] %vm881, %v861
      %895 = vst.msk [vmem:[%s257 + $0x68] sm:$0xff] %vm881, %v862
      %896 = vst.msk [vmem:[%s257 + $0x70] sm:$0xff] %vm881, %v863
      %897 = vst.msk [vmem:[%s257 + $0x78] sm:$0xff] %vm881, %v864
      %898 = vst.msk [vmem:[%s257 + $0x80] sm:$0xff] %vm881, %v865
      %899 = vst.msk [vmem:[%s257 + $0x88] sm:$0xff] %vm881, %v866
      %900 = vst.msk [vmem:[%s257 + $0x90] sm:$0xff] %vm881, %v867
      %901 = vst.msk [vmem:[%s257 + $0x98] sm:$0xff] %vm881, %v868
      %902 = vst.msk [vmem:[%s257 + $0xa0] sm:$0xff] %vm881, %v869
      %903 = vst.msk [vmem:[%s257 + $0xa8] sm:$0xff] %vm881, %v870
      %904 = vst.msk [vmem:[%s257 + $0xb0] sm:$0xff] %vm881, %v871
      %905 = vst.msk [vmem:[%s257 + $0xb8] sm:$0xff] %vm881, %v872
      %906 = vst.msk [vmem:[%s257 + $0xc0] sm:$0xff] %vm881, %v873
      %907 = vst.msk [vmem:[%s257 + $0xc8] sm:$0xff] %vm881, %v874
      %908 = vst.msk [vmem:[%s257 + $0xd0] sm:$0xff] %vm881, %v875
      %909 = vst.msk [vmem:[%s257 + $0xd8] sm:$0xff] %vm881, %v876
      %910 = vst.msk [vmem:[%s257 + $0xe0] sm:$0xff] %vm881, %v877
      %911 = vst.msk [vmem:[%s257 + $0xe8] sm:$0xff] %vm881, %v878
      %912 = vst.msk [vmem:[%s257 + $0xf0] sm:$0xff] %vm881, %v879
      %913 = vst.msk [vmem:[%s257 + $0xf8] sm:$0xff] %vm881, %v880
      %s914 = smul.u32 32, %s18
      %p915 = scmp.lt.s32.totalorder %s914, 255
      %s916 = scalar_select %p915, %s914, 255
      %s917 = smul.addr %s916, 8
      %s918 = scalar_lea.vmem %s4, %s917
      %s919 = smul.u32 32, %s18
      %p920 = scmp.lt.s32.totalorder %s919, 255
      %s921 = scalar_select %p920, %s919, 255
      %s922 = smul.addr %s921, 8
      %s923 = scalar_lea.vmem %s5, %s922
      // Predicated region
      $region37: #{tpu_custom_call.1} parent=35 // pred_check
        %p924 = pneg %p130
      $region38: #{tpu_custom_call.1} parent=35 // pred_check_branch
        %926 = sbr.rel (%p924) target = $region40
      $region39: #{tpu_custom_call.1} parent=35 // pred_region
        %s927 = smul.u32 32, %s18
      $region40: #{tpu_custom_call.1} parent=35 // pred_fallthru
        _
      // Predicated region
      $region41: #{tpu_custom_call.1} parent=35 // pred_check
        %p928 = pneg %p156
      $region42: #{tpu_custom_call.1} parent=35 // pred_check_branch
        %930 = sbr.rel (%p928) target = $region44
      $region43: #{tpu_custom_call.1} parent=35 // pred_region
        %s931 = smul.u32 32, %s18
      $region44: #{tpu_custom_call.1} parent=35 // pred_fallthru
        _
    $region36: #{tpu_custom_call.1} parent=5 // pred_fallthru
      _
    %p932 = scmp.le.s32.totalorder 2, %s13
    // Predicated region
    $region45: #{tpu_custom_call.1} parent=5 // pred_check
      %p933 = pneg %p932
    $region46: #{tpu_custom_call.1} parent=5 // pred_check_branch
      %935 = sbr.rel (%p933) target = $region48
    $region47: #{tpu_custom_call.1} parent=5 // pred_region
      %s936 = ssub.s32 %s13, 2
      // Predicated region
      $region49: #{tpu_custom_call.1} parent=47 // pred_check
        %p937 = pneg %p136
      $region50: #{tpu_custom_call.1} parent=47 // pred_check_branch
        %939 = sbr.rel (%p937) target = $region52
      $region51: #{tpu_custom_call.1} parent=47 // pred_region
        %s940 = smul.u32 32, %s19
        %p941 = scmp.lt.s32.totalorder %s940, 255
        %s942 = scalar_select %p941, %s940, 255
        %s943 = smul.addr %s942, 8
        %s944 = scalar_lea.vmem %s4, %s943
      $region52: #{tpu_custom_call.1} parent=47 // pred_fallthru
        _
      // Predicated region
      $region53: #{tpu_custom_call.1} parent=47 // pred_check
        %p945 = pneg %p162
      $region54: #{tpu_custom_call.1} parent=47 // pred_check_branch
        %947 = sbr.rel (%p945) target = $region56
      $region55: #{tpu_custom_call.1} parent=47 // pred_region
        %s948 = smul.u32 32, %s19
        %p949 = scmp.lt.s32.totalorder %s948, 255
        %s950 = scalar_select %p949, %s948, 255
        %s951 = smul.addr %s950, 8
        %s952 = scalar_lea.vmem %s5, %s951
      $region56: #{tpu_custom_call.1} parent=47 // pred_fallthru
        _
    $region48: #{tpu_custom_call.1} parent=5 // pred_fallthru
      _
  $region6: #{tpu_custom_call.1} parent=0 // loop_footer
    %s17 = sadd.s32 1, %s13
  $region7: #{tpu_custom_call.1} parent=0 // loop_footer_branch
    %12 = sbr.rel target = $region3
  $region8: #{tpu_custom_call.1} parent=0 // loop_exit
    _

</llo_original>
